<compile_context>
chip_gen: v7x
topology: tpu7x:2x2x1
jax: 0.10.0
libtpu: 0.0.40
codegen_flags: <defaults>
</compile_context>

<pallas_src>
import functools

import jax
import jax.numpy as jnp
from jax import lax
from jax.experimental import pallas as pl
from jax.experimental.pallas import tpu as pltpu

LANE = 128
MXU_ROW_TARGET = 256     # LHS rows per weight push (256 feeds the 256-deep MXU)
PACK_KH_MAX_CIN = 128    # pack kh along K only when per-tap K is this small


def _round_up(x, m):
    return (x + m - 1) // m * m


def _pick_rb(ho, wp, target=MXU_ROW_TARGET):
    """Output-row block size: RB | Ho (no partial blocks) and RB*wp ~<= target."""
    max_rb = max(1, target // wp)
    if ho <= max_rb:
        return ho
    for d in range(max_rb, 0, -1):
        if ho % d == 0:
            return d
    return 1


@functools.lru_cache(maxsize=None)
def _vmem_limit_bytes():
    phys = 64 * 1024 * 1024
    try:
        phys = int(pltpu.get_tpu_info().vmem_capacity_bytes)
    except Exception:
        pass
    # Leave headroom for Mosaic-internal scratch; cap at ~100 MiB on 128 MiB parts.
    return int(min(100 * 1024 * 1024, max(32 * 1024 * 1024, phys - 16 * 1024 * 1024)))


# --------------------------- Pallas kernel ---------------------------------
def _conv3x3_kernel(x_hbm, w_ref, b_ref, o_ref, slab_ref, dma_sem, *,
                    h, wp, rb, wo, cin, coutp, cout_store, relu, pack_kh):
    """One (batch, row-block) step of a 3x3 VALID conv + bias (+ReLU).

    x_hbm:    (B*H*wp, cin)  bf16 in HBM (spatial flattened row-major, W padded
                              with zeros up to wp; padded channels are zero).
    w_ref:    (3*cin, 3*coutp) bf16; block (kh, kw) at rows [kh*cin:(kh+1)*cin],
                              cols [kw*coutp:(kw+1)*coutp].
    b_ref:    (1, coutp)     f32 bias (zero in lane-padding columns).
    o_ref:    (1, rb, wo, cout_store) bf16 output block.
    slab_ref: ((rb+2)*wp, cin) bf16 VMEM scratch for this step's input rows.
    """
    bb = pl.program_id(0)
    jj = pl.program_id(1)
    n = rb * wp

    # Fetch this block's (rb + 2)-row halo slab from HBM.
    start = pl.multiple_of((bb * h + jj * rb) * wp, 8)
    cp = pltpu.make_async_copy(x_hbm.at[pl.ds(start, (rb + 2) * wp), :],
                               slab_ref, dma_sem)
    cp.start()
    cp.wait()

    # Accumulator initialized with the broadcast bias (one add saved per block).
    acc = jnp.broadcast_to(b_ref[...], (n, coutp)).astype(jnp.float32)

    if pack_kh:
        # Pack the 3 kh taps along K: one (n, 3*cin) x (3*cin, coutp) matmul per kw.
        lhs = jnp.concatenate(
            [slab_ref[kh * wp:(kh + rb) * wp, :] for kh in range(3)], axis=1)
        for kw in range(3):
            p = jnp.dot(lhs, w_ref[:, kw * coutp:(kw + 1) * coutp],
                        preferred_element_type=jnp.float32)
            # acc[m] += p[m + kw]; the cyclic wrap lands only in padded-W columns
            # of the last row, which are never stored.
            acc = acc + (p if kw == 0 else pltpu.roll(p, n - kw, axis=0))
    else:
        for kh in range(3):
            lhs = slab_ref[kh * wp:(kh + rb) * wp, :]              # (n, cin)
            for kw in range(3):
                wt = w_ref[kh * cin:(kh + 1) * cin,
                           kw * coutp:(kw + 1) * coutp]            # (cin, coutp)
                p = jnp.dot(lhs, wt, preferred_element_type=jnp.float32)
                acc = acc + (p if kw == 0 else pltpu.roll(p, n - kw, axis=0))

    if relu:
        acc = jnp.maximum(acc, 0.0)

    out = acc.astype(o_ref.dtype)
    for li in range(rb):                     # rb is small; aligned sublane slices
        o_ref[0, li, :, :] = out[li * wp: li * wp + wo, :cout_store]


def conv3x3_pallas(x, w, b, *, relu, narrow_store=False):
    """VALID 3x3 cross-correlation matching nn.Conv2d (bias + optional ReLU).

    x: (B, H, W, Cin_x) NHWC.  Cin_x may exceed the weight's Cin; the extra
       (lane-padding) channels are guaranteed zero.
    w: (Cout, Cin, 3, 3) PyTorch OIHW;  b: (Cout,)
    Returns (B, H-2, W-2, Cstore) bf16.  Cstore = round_up(Cout, 128), or
    round_up(Cout, 8) when narrow_store=True (final layer); channels >= Cout
    are exactly zero.
    """
    B, H, W, Cin_x = x.shape
    Cout, Cin_w, KH, KW = w.shape
    assert (KH, KW) == (3, 3) and Cin_x >= Cin_w
    Ho, Wo = H - 2, W - 2
    Coutp = _round_up(Cout, LANE)
    cout_store = _round_up(Cout, 8) if narrow_store else Coutp

    # Weight layout: (kh, ci, kw, co); pad ci to Cin_x and co to Coutp with zeros.
    wt = jnp.transpose(w, (2, 1, 3, 0))
    wt = jnp.pad(wt, ((0, 0), (0, Cin_x - Cin_w), (0, 0), (0, Coutp - Cout)))
    wmat = wt.reshape(3 * Cin_x, 3 * Coutp).astype(jnp.bfloat16)
    bvec = jnp.pad(b, (0, Coutp - Cout)).reshape(1, Coutp).astype(jnp.float32)

    # Zero-pad W up to a multiple of 8 (sublane alignment of matmul rows).
    Wp = max(_round_up(W, 8), 8)
    assert Wp >= Wo + 2
    xb = x.astype(jnp.bfloat16)
    if Wp != W:
        xb = jnp.pad(xb, ((0, 0), (0, 0), (0, Wp - W), (0, 0)))
    xb = xb.reshape(B * H * Wp, Cin_x)          # contiguous -> free reshape

    RB = _pick_rb(Ho, Wp)
    NJ = Ho // RB
    assert NJ * RB == Ho

    kernel = functools.partial(
        _conv3x3_kernel, h=H, wp=Wp, rb=RB, wo=Wo, cin=Cin_x, coutp=Coutp,
        cout_store=cout_store, relu=relu, pack_kh=(Cin_x <= PACK_KH_MAX_CIN))

    return pl.pallas_call(
        kernel,
        out_shape=jax.ShapeDtypeStruct((B, Ho, Wo, cout_store), jnp.bfloat16),
        grid=(B, NJ),
        in_specs=[
            pl.BlockSpec(memory_space=pl.ANY),                        # stays in HBM
            pl.BlockSpec((3 * Cin_x, 3 * Coutp), lambda bb, jj: (0, 0)),
            pl.BlockSpec((1, Coutp), lambda bb, jj: (0, 0)),
        ],
        out_specs=pl.BlockSpec((1, RB, Wo, cout_store),
                               lambda bb, jj: (bb, jj, 0, 0)),
        scratch_shapes=[
            pltpu.VMEM(((RB + 2) * Wp, Cin_x), jnp.bfloat16),
            pltpu.SemaphoreType.DMA(()),
        ],
        compiler_params=pltpu.CompilerParams(
            dimension_semantics=("parallel", "parallel"),   # batch & row blocks
            vmem_limit_bytes=_vmem_limit_bytes(),
        ),
    )(xb, wmat, bvec)


# Pure-JAX reference conv (correctness check only).
def conv3x3_ref(x, w, b, *, relu, narrow_store=False):
    del narrow_store
    y = lax.conv_general_dilated(
        x.astype(jnp.float32), w, window_strides=(1, 1), padding="VALID",
        dimension_numbers=("NHWC", "OIHW", "NHWC"),
        precision=lax.Precision.HIGHEST)
    y = y + b.reshape(1, 1, 1, -1)
    if relu:
        y = jnp.maximum(y, 0.0)
    return y


# --------------------------- glue ops (plain JAX) ---------------------------
def upsample2x(x):  # nn.Upsample(scale_factor=2), nearest; NHWC
    return jnp.repeat(jnp.repeat(x, 2, axis=1), 2, axis=2)


def reflect_pad1(x):  # nn.ReflectionPad2d((1,1,1,1)); NHWC
    return jnp.pad(x, ((0, 0), (1, 1), (1, 1), (0, 0)), mode="reflect")


# --------------------------- Decoder forward --------------------------------
def decoder_forward(params, F_c3, F_c4, F_c5, *, shape, conv):
    B = F_c3.shape[0]
    s4, s8, s16 = shape // 4, shape // 8, shape // 16

    F_cs3 = jnp.transpose(F_c3.reshape(B, 256, s4, s4), (0, 2, 3, 1))
    F_cs4 = jnp.transpose(F_c4.reshape(B, 512, s8, s8), (0, 2, 3, 1))
    F_cs5 = jnp.transpose(F_c5.reshape(B, 512, s16, s16), (0, 2, 3, 1))

    x = upsample2x(F_cs5) + F_cs4                              # upsample_f5 + add
    x = conv(x, *params["conv_f5"], relu=True)                 # conv_f5 + relu
    x = reflect_pad1(x)
    x = conv(x, *params["conv_f4"], relu=True)
    x = reflect_pad1(x)
    x = upsample2x(x)
    x = jnp.concatenate([x, F_cs3.astype(x.dtype)], axis=-1)   # channel concat
    x = conv(x, *params["conv1_f3"], relu=True)
    x = reflect_pad1(x)
    x = conv(x, *params["conv2_f3"], relu=True)
    x = reflect_pad1(x)
    x = conv(x, *params["conv3_f3"], relu=True)
    x = reflect_pad1(x)
    x = conv(x, *params["conv_f3"], relu=True)
    x = reflect_pad1(x)
    x = upsample2x(x)
    x = conv(x, *params["conv1_f2"], relu=True)
    x = reflect_pad1(x)
    x = conv(x, *params["conv2_f2"], relu=True)
    x = reflect_pad1(x)
    x = upsample2x(x)
    x = conv(x, *params["conv_f1"], relu=True)
    x = reflect_pad1(x)
    x = conv(x, *params["conv"], relu=False, narrow_store=True)  # final conv
    x = reflect_pad1(x)                                          # padding2_f1
    x = x[..., :3]                                               # drop pad chans
    return jnp.transpose(x, (0, 3, 1, 2)).astype(jnp.float32)    # back to NCHW


# --------------------------- params ------------------------------------------
def init_params(key):
    layer_defs = [
        ("conv_f5", 512, 512), ("conv_f4", 512, 256),
        ("conv1_f3", 512, 256), ("conv2_f3", 256, 256), ("conv3_f3", 256, 256),
        ("conv_f3", 256, 128),
        ("conv1_f2", 128, 128), ("conv2_f2", 128, 64),
        ("conv_f1", 64, 64), ("conv", 64, 3),
    ]
    params = {}
    keys = jax.random.split(key, len(layer_defs))
    for k, (name, cin, cout) in zip(keys, layer_defs):
        kw_, kb_ = jax.random.split(k)
        scale = 1.0 / jnp.sqrt(9.0 * cin)
        params[name] = (
            jax.random.normal(kw_, (cout, cin, 3, 3), jnp.float32) * scale,
            jax.random.normal(kb_, (cout,), jnp.float32) * scale,
        )
    return params


# --------------------------- main ---------------------------------------------
if __name__ == "__main__":
    SHAPE = 32   # output image is SHAPE x SHAPE; features are SHAPE/{4,8,16}
    B = 2

    key = jax.random.PRNGKey(0)
    kp, k3, k4, k5 = jax.random.split(key, 4)
    params = init_params(kp)
    F_c3 = jax.random.normal(k3, (B, 256, (SHAPE // 4) ** 2), jnp.float32)
    F_c4 = jax.random.normal(k4, (B, 512, (SHAPE // 8) ** 2), jnp.float32)
    F_c5 = jax.random.normal(k5, (B, 512, (SHAPE // 16) ** 2), jnp.float32)

    # --- single-layer check (tight tolerance: both paths see bf16-rounded inputs;
    #     exercises row-blocking NJ>1, kh-packing, odd W, and the zero-pad invariant).
    xu = jax.random.normal(jax.random.PRNGKey(1), (2, 34, 30, 128), jnp.float32)
    wu = jax.random.normal(jax.random.PRNGKey(2), (64, 128, 3, 3),
                           jnp.float32) / jnp.sqrt(9.0 * 128)
    bu = jax.random.normal(jax.random.PRNGKey(3), (64,), jnp.float32) * 0.1
    xu = xu.astype(jnp.bfloat16).astype(jnp.float32)
    wu = wu.astype(jnp.bfloat16).astype(jnp.float32)
    got = jax.block_until_ready(conv3x3_pallas(xu, wu, bu, relu=True))
    want = conv3x3_ref(xu, wu, bu, relu=True)
    assert got.shape == (2, 32, 28, 128), got.shape
    unit_err = float(jnp.max(jnp.abs(got[..., :64].astype(jnp.float32) - want)))
    unit_scale = float(jnp.max(jnp.abs(want)))
    assert unit_err <= 1e-2 * unit_scale + 1e-3, (unit_err, unit_scale)
    assert float(jnp.max(jnp.abs(got[..., 64:].astype(jnp.float32)))) == 0.0, \
        "lane-padding channels must stay exactly zero"

    # --- full decoder forward with the Pallas conv path.
    fwd_pallas = jax.jit(functools.partial(decoder_forward, shape=SHAPE,
                                           conv=conv3x3_pallas))
    out = jax.block_until_ready(fwd_pallas(params, F_c3, F_c4, F_c5))
    assert out.shape == (B, 3, SHAPE, SHAPE), out.shape

    # End-to-end check vs a pure-JAX f32 reference of the same graph (bf16
    # activation drift compounds across 10 convs -> looser tolerance here).
    fwd_ref = jax.jit(functools.partial(decoder_forward, shape=SHAPE,
                                        conv=conv3x3_ref))
    ref = jax.block_until_ready(fwd_ref(params, F_c3, F_c4, F_c5))
    max_err = float(jnp.max(jnp.abs(out - ref)))
    scale = float(jnp.max(jnp.abs(ref)))
    assert max_err <= 0.1 * scale + 2e-2, f"max abs err {max_err} vs scale {scale}"

    print("KERNEL_OK")
</pallas_src>

<mosaic_0001>
module attributes {stable_mosaic.version = 11 : i64} {
  func.func @_conv3x3_kernel(%arg0: i32, %arg1: i32, %arg2: memref<2176x128xbf16, #tpu.memory_space<any>>, %arg3: memref<384x384xbf16, #tpu.memory_space<vmem>>, %arg4: memref<1x128xf32, #tpu.memory_space<vmem>>, %arg5: memref<1x8x28x128xbf16, #tpu.memory_space<vmem>>, %arg6: memref<320x128xbf16, #tpu.memory_space<vmem>>, %arg7: memref<!tpu.dma_semaphore, #tpu.memory_space<semaphore_mem>>) attributes {dimension_semantics = [#tpu.dimension_semantics<parallel>, #tpu.dimension_semantics<parallel>], iteration_bounds = array<i64: 2, 4>, scalar_prefetch = 0 : i64, scratch_operands = 2 : i64, tpu.core_type = #tpu.core_type<tc>, window_params = [{}, {pipeline_mode = #tpu.pipeline_mode<synchronous>, transform_indices = @transform_1, window_bounds = array<i64: 384, 384>}, {pipeline_mode = #tpu.pipeline_mode<synchronous>, transform_indices = @transform_2, window_bounds = array<i64: 1, 128>}, {transform_indices = @transform_3, window_bounds = array<i64: 1, 8, 28, 128>}]} {
    %c34_i32 = arith.constant 34 : i32
    %0 = arith.muli %arg0, %c34_i32 : i32
    %c8_i32 = arith.constant 8 : i32
    %1 = arith.muli %arg1, %c8_i32 : i32
    %2 = arith.addi %0, %1 : i32
    %c32_i32 = arith.constant 32 : i32
    %3 = arith.muli %2, %c32_i32 : i32
    %4 = tpu.assume_multiple %3, 8 : i32
    %c0_i32 = arith.constant 0 : i32
    %5 = tpu.memref_slice %arg2[%4, %c0_i32] : memref<2176x128xbf16, #tpu.memory_space<any>> -> memref<320x128xbf16, #tpu.memory_space<any>>
    tpu.enqueue_dma source(%5 : memref<320x128xbf16, #tpu.memory_space<any>>) target(%arg6 : memref<320x128xbf16, #tpu.memory_space<vmem>>) target_semaphore(%arg7 : memref<!tpu.dma_semaphore, #tpu.memory_space<semaphore_mem>>)
    %c0_i32_0 = arith.constant 0 : i32
    %6 = tpu.memref_slice %arg2[%4, %c0_i32_0] : memref<2176x128xbf16, #tpu.memory_space<any>> -> memref<320x128xbf16, #tpu.memory_space<any>>
    tpu.wait_dma2 semaphore(%arg7 : memref<!tpu.dma_semaphore, #tpu.memory_space<semaphore_mem>>) src(%6 : memref<320x128xbf16, #tpu.memory_space<any>>) dst(%arg6 : memref<320x128xbf16, #tpu.memory_space<vmem>>)
    %c0 = arith.constant 0 : index
    %c0_1 = arith.constant 0 : index
    %7 = vector.load %arg4[%c0, %c0_1] : memref<1x128xf32, #tpu.memory_space<vmem>>, vector<1x128xf32>
    %8 = vector.shape_cast %7 : vector<1x128xf32> to vector<1x128xf32>
    %9 = vector.broadcast %8 : vector<1x128xf32> to vector<256x128xf32>
    %c0_2 = arith.constant 0 : index
    %c0_3 = arith.constant 0 : index
    %10 = vector.load %arg6[%c0_2, %c0_3] : memref<320x128xbf16, #tpu.memory_space<vmem>>, vector<256x128xbf16>
    %c32 = arith.constant 32 : index
    %c0_4 = arith.constant 0 : index
    %11 = vector.load %arg6[%c32, %c0_4] : memref<320x128xbf16, #tpu.memory_space<vmem>>, vector<256x128xbf16>
    %c64 = arith.constant 64 : index
    %c0_5 = arith.constant 0 : index
    %12 = vector.load %arg6[%c64, %c0_5] : memref<320x128xbf16, #tpu.memory_space<vmem>>, vector<256x128xbf16>
    %13 = tpu.concatenate %10, %11, %12 in 1 : vector<256x128xbf16>, vector<256x128xbf16>, vector<256x128xbf16> -> vector<256x384xbf16>
    %c0_6 = arith.constant 0 : index
    %c0_7 = arith.constant 0 : index
    %14 = vector.load %arg3[%c0_6, %c0_7] : memref<384x384xbf16, #tpu.memory_space<vmem>>, vector<384x128xbf16>
    %cst = arith.constant dense<0.000000e+00> : vector<256x128xf32>
    %15 = tpu.matmul %13, %14, %cst {dimension_numbers = #tpu.dot_dimension_numbers<[1], [0], [0], [1], [0, 0, 1, 1], [], []>} : vector<256x384xbf16>, vector<384x128xbf16>, vector<256x128xf32> -> vector<256x128xf32>
    %16 = arith.addf %9, %15 : vector<256x128xf32>
    %c0_8 = arith.constant 0 : index
    %c128 = arith.constant 128 : index
    %17 = vector.load %arg3[%c0_8, %c128] : memref<384x384xbf16, #tpu.memory_space<vmem>>, vector<384x128xbf16>
    %cst_9 = arith.constant dense<0.000000e+00> : vector<256x128xf32>
    %18 = tpu.matmul %13, %17, %cst_9 {dimension_numbers = #tpu.dot_dimension_numbers<[1], [0], [0], [1], [0, 0, 1, 1], [], []>} : vector<256x384xbf16>, vector<384x128xbf16>, vector<256x128xf32> -> vector<256x128xf32>
    %c255_i32 = arith.constant 255 : i32
    %19 = tpu.dynamic_rotate %18 by %c255_i32 dim 0 : vector<256x128xf32>, i32 -> vector<256x128xf32>
    %20 = arith.addf %16, %19 : vector<256x128xf32>
    %c0_10 = arith.constant 0 : index
    %c256 = arith.constant 256 : index
    %21 = vector.load %arg3[%c0_10, %c256] : memref<384x384xbf16, #tpu.memory_space<vmem>>, vector<384x128xbf16>
    %cst_11 = arith.constant dense<0.000000e+00> : vector<256x128xf32>
    %22 = tpu.matmul %13, %21, %cst_11 {dimension_numbers = #tpu.dot_dimension_numbers<[1], [0], [0], [1], [0, 0, 1, 1], [], []>} : vector<256x384xbf16>, vector<384x128xbf16>, vector<256x128xf32> -> vector<256x128xf32>
    %c254_i32 = arith.constant 254 : i32
    %23 = tpu.dynamic_rotate %22 by %c254_i32 dim 0 : vector<256x128xf32>, i32 -> vector<256x128xf32>
    %24 = arith.addf %20, %23 : vector<256x128xf32>
    %cst_12 = arith.constant 0.000000e+00 : f32
    %25 = vector.broadcast %cst_12 : f32 to vector<256x128xf32>
    %26 = arith.maximumf %24, %25 : vector<256x128xf32>
    %27 = arith.truncf %26 : vector<256x128xf32> to vector<256x128xbf16>
    %28 = vector.extract_strided_slice %27 {offsets = [0, 0], sizes = [28, 128], strides = [1, 1]} : vector<256x128xbf16> to vector<28x128xbf16>
    %c0_13 = arith.constant 0 : index
    %c0_14 = arith.constant 0 : index
    %c0_15 = arith.constant 0 : index
    %c0_16 = arith.constant 0 : index
    %29 = vector.load %arg5[%c0_13, %c0_14, %c0_15, %c0_16] : memref<1x8x28x128xbf16, #tpu.memory_space<vmem>>, vector<1x1x28x128xbf16>
    %30 = vector.shape_cast %29 : vector<1x1x28x128xbf16> to vector<28x128xbf16>
    %31 = vector.shape_cast %28 : vector<28x128xbf16> to vector<1x1x28x128xbf16>
    tpu.vector_store %arg5[%c0_13, %c0_14, %c0_15, %c0_16], %31 {strides = array<i32>} : memref<1x8x28x128xbf16, #tpu.memory_space<vmem>>, vector<1x1x28x128xbf16>,
    %32 = vector.extract_strided_slice %27 {offsets = [32, 0], sizes = [28, 128], strides = [1, 1]} : vector<256x128xbf16> to vector<28x128xbf16>
    %c0_17 = arith.constant 0 : index
    %c1 = arith.constant 1 : index
    %c0_18 = arith.constant 0 : index
    %c0_19 = arith.constant 0 : index
    %33 = vector.load %arg5[%c0_17, %c1, %c0_18, %c0_19] : memref<1x8x28x128xbf16, #tpu.memory_space<vmem>>, vector<1x1x28x128xbf16>
    %34 = vector.shape_cast %33 : vector<1x1x28x128xbf16> to vector<28x128xbf16>
    %35 = vector.shape_cast %32 : vector<28x128xbf16> to vector<1x1x28x128xbf16>
    tpu.vector_store %arg5[%c0_17, %c1, %c0_18, %c0_19], %35 {strides = array<i32>} : memref<1x8x28x128xbf16, #tpu.memory_space<vmem>>, vector<1x1x28x128xbf16>,
    %36 = vector.extract_strided_slice %27 {offsets = [64, 0], sizes = [28, 128], strides = [1, 1]} : vector<256x128xbf16> to vector<28x128xbf16>
    %c0_20 = arith.constant 0 : index
    %c2 = arith.constant 2 : index
    %c0_21 = arith.constant 0 : index
    %c0_22 = arith.constant 0 : index
    %37 = vector.load %arg5[%c0_20, %c2, %c0_21, %c0_22] : memref<1x8x28x128xbf16, #tpu.memory_space<vmem>>, vector<1x1x28x128xbf16>
    %38 = vector.shape_cast %37 : vector<1x1x28x128xbf16> to vector<28x128xbf16>
    %39 = vector.shape_cast %36 : vector<28x128xbf16> to vector<1x1x28x128xbf16>
    tpu.vector_store %arg5[%c0_20, %c2, %c0_21, %c0_22], %39 {strides = array<i32>} : memref<1x8x28x128xbf16, #tpu.memory_space<vmem>>, vector<1x1x28x128xbf16>,
    %40 = vector.extract_strided_slice %27 {offsets = [96, 0], sizes = [28, 128], strides = [1, 1]} : vector<256x128xbf16> to vector<28x128xbf16>
    %c0_23 = arith.constant 0 : index
    %c3 = arith.constant 3 : index
    %c0_24 = arith.constant 0 : index
    %c0_25 = arith.constant 0 : index
    %41 = vector.load %arg5[%c0_23, %c3, %c0_24, %c0_25] : memref<1x8x28x128xbf16, #tpu.memory_space<vmem>>, vector<1x1x28x128xbf16>
    %42 = vector.shape_cast %41 : vector<1x1x28x128xbf16> to vector<28x128xbf16>
    %43 = vector.shape_cast %40 : vector<28x128xbf16> to vector<1x1x28x128xbf16>
    tpu.vector_store %arg5[%c0_23, %c3, %c0_24, %c0_25], %43 {strides = array<i32>} : memref<1x8x28x128xbf16, #tpu.memory_space<vmem>>, vector<1x1x28x128xbf16>,
    %44 = vector.extract_strided_slice %27 {offsets = [128, 0], sizes = [28, 128], strides = [1, 1]} : vector<256x128xbf16> to vector<28x128xbf16>
    %c0_26 = arith.constant 0 : index
    %c4 = arith.constant 4 : index
    %c0_27 = arith.constant 0 : index
    %c0_28 = arith.constant 0 : index
    %45 = vector.load %arg5[%c0_26, %c4, %c0_27, %c0_28] : memref<1x8x28x128xbf16, #tpu.memory_space<vmem>>, vector<1x1x28x128xbf16>
    %46 = vector.shape_cast %45 : vector<1x1x28x128xbf16> to vector<28x128xbf16>
    %47 = vector.shape_cast %44 : vector<28x128xbf16> to vector<1x1x28x128xbf16>
    tpu.vector_store %arg5[%c0_26, %c4, %c0_27, %c0_28], %47 {strides = array<i32>} : memref<1x8x28x128xbf16, #tpu.memory_space<vmem>>, vector<1x1x28x128xbf16>,
    %48 = vector.extract_strided_slice %27 {offsets = [160, 0], sizes = [28, 128], strides = [1, 1]} : vector<256x128xbf16> to vector<28x128xbf16>
    %c0_29 = arith.constant 0 : index
    %c5 = arith.constant 5 : index
    %c0_30 = arith.constant 0 : index
    %c0_31 = arith.constant 0 : index
    %49 = vector.load %arg5[%c0_29, %c5, %c0_30, %c0_31] : memref<1x8x28x128xbf16, #tpu.memory_space<vmem>>, vector<1x1x28x128xbf16>
    %50 = vector.shape_cast %49 : vector<1x1x28x128xbf16> to vector<28x128xbf16>
    %51 = vector.shape_cast %48 : vector<28x128xbf16> to vector<1x1x28x128xbf16>
    tpu.vector_store %arg5[%c0_29, %c5, %c0_30, %c0_31], %51 {strides = array<i32>} : memref<1x8x28x128xbf16, #tpu.memory_space<vmem>>, vector<1x1x28x128xbf16>,
    %52 = vector.extract_strided_slice %27 {offsets = [192, 0], sizes = [28, 128], strides = [1, 1]} : vector<256x128xbf16> to vector<28x128xbf16>
    %c0_32 = arith.constant 0 : index
    %c6 = arith.constant 6 : index
    %c0_33 = arith.constant 0 : index
    %c0_34 = arith.constant 0 : index
    %53 = vector.load %arg5[%c0_32, %c6, %c0_33, %c0_34] : memref<1x8x28x128xbf16, #tpu.memory_space<vmem>>, vector<1x1x28x128xbf16>
    %54 = vector.shape_cast %53 : vector<1x1x28x128xbf16> to vector<28x128xbf16>
    %55 = vector.shape_cast %52 : vector<28x128xbf16> to vector<1x1x28x128xbf16>
    tpu.vector_store %arg5[%c0_32, %c6, %c0_33, %c0_34], %55 {strides = array<i32>} : memref<1x8x28x128xbf16, #tpu.memory_space<vmem>>, vector<1x1x28x128xbf16>,
    %56 = vector.extract_strided_slice %27 {offsets = [224, 0], sizes = [28, 128], strides = [1, 1]} : vector<256x128xbf16> to vector<28x128xbf16>
    %c0_35 = arith.constant 0 : index
    %c7 = arith.constant 7 : index
    %c0_36 = arith.constant 0 : index
    %c0_37 = arith.constant 0 : index
    %57 = vector.load %arg5[%c0_35, %c7, %c0_36, %c0_37] : memref<1x8x28x128xbf16, #tpu.memory_space<vmem>>, vector<1x1x28x128xbf16>
    %58 = vector.shape_cast %57 : vector<1x1x28x128xbf16> to vector<28x128xbf16>
    %59 = vector.shape_cast %56 : vector<28x128xbf16> to vector<1x1x28x128xbf16>
    tpu.vector_store %arg5[%c0_35, %c7, %c0_36, %c0_37], %59 {strides = array<i32>} : memref<1x8x28x128xbf16, #tpu.memory_space<vmem>>, vector<1x1x28x128xbf16>,
    return
  }
  func.func @transform_1(%arg0: i32, %arg1: i32) -> (i32, i32) {
    %c0_i32 = arith.constant 0 : i32
    %c0_i32_0 = arith.constant 0 : i32
    %c0_i32_1 = arith.constant 0 : i32
    return %c0_i32, %c0_i32_0 : i32, i32
  }
  func.func @transform_2(%arg0: i32, %arg1: i32) -> (i32, i32) {
    %c0_i32 = arith.constant 0 : i32
    %c0_i32_0 = arith.constant 0 : i32
    %c0_i32_1 = arith.constant 0 : i32
    return %c0_i32, %c0_i32_0 : i32, i32
  }
  func.func @transform_3(%arg0: i32, %arg1: i32) -> (i32, i32, i32, i32) {
    %c0_i32 = arith.constant 0 : i32
    %c0_i32_0 = arith.constant 0 : i32
    %c0_i32_1 = arith.constant 0 : i32
    return %arg0, %arg1, %c0_i32, %c0_i32_0 : i32, i32, i32, i32
  }
}

</mosaic_0001>

<llo_original>
// kernel: tpu_custom_call.1
$region0: #{tpu_custom_call.1}
  #allocation0 [shape = 'u32[]', space=smem, size = 0x4, offset = 0x4, fixed_abs, tag = 'smem constant byte address 0x4 - core index']
  #allocation1 [shape = 'u32[144,128]{1,0:T(1,128)}', space=vmem, size = 0x12000, scoped, tag = 'internal scratch']
  #allocation2 [shape = 'bf16[320,128]{1,0:T(16,128)(2,1)}', space=vmem, size = 0x14000, scoped, tag = 'scratch operand']
  #allocation3 [shape = 's32[1]{0}', space=sflag, size = 0x4, scoped, tag = 'scratch operand']
  #allocation6 [shape = 's32[]', space=sflag, size = 0x4, offset = 0, fixed_abs, tag = 'sflag constant byte address 0x0 - dummy sync flag']
  #allocation7 [shape = 's32[]', space=sflag, size = 0x4, offset = 0, fixed_abs, tag = 'sflag constant byte address 0x0 - dummy sync flag']
  #allocation8 [shape = 'u32[]', space=smem, size = 0x4, offset = 0x44, fixed_abs, tag = 'smem constant byte address 0x44 - assertion arg 0']
  #allocation9 [shape = 'u32[]', space=smem, size = 0x4, offset = 0x48, fixed_abs, tag = 'smem constant byte address 0x48 - assertion arg 1']
  %s0 = inlined_call_operand.hbm [shape: bf16[2176,128], index: 0, kind: input, shape index: {}]
  %s1 = inlined_call_operand.hbm [shape: bf16[384,384], index: 1, kind: input, shape index: {}]
  %s2 = inlined_call_operand.vmem [shape: f32[1,128], index: 2, kind: input, shape index: {}]
  %s3 = inlined_call_operand.vmem [shape: bf16[2,32,28,128], index: 3, kind: output, shape index: {}]
  %s4 = sld [smem:[#allocation0]]
  $region49: #{tpu_custom_call.1} parent=0
    _
  %s6 = ssub.s32 1, %s4
  %s7 = scalar_select 0, %s6, %s4
  $region1: #{tpu_custom_call.1} parent=0
    #allocation4 [shape = 'u8[294912]{0}', space=vmem, size = 0x48000, scoped, tag = 'input window, operand 1, single buffered']
    #allocation5 [shape = 's32[2]{0}', space=sflag, size = 0x8, scoped, tag = 'scoped memory for tpu_custom_call.1']
    %8 = vsyncpa [#allocation5], 0
    loop: start=0, step=1, limit=10
    $region2: #{tpu_custom_call.1} parent=1 // loop_pre_header
      _
    $region3: #{tpu_custom_call.1} parent=1 // loop_header
      %s10 = sphi 0, %s14
      %p11 = scmp.ge.s32.totalorder %s10, 10
      %s17 = sphi 0, %s29
      %s18 = sphi 0, %s25
      %s19 = sphi 0, %s17
      %s20 = sphi 0, %s18
      %s21 = sphi 0, %s19
      %s22 = sphi 0, %s20
      %s30 = sphi 0, %s30
      %s32 = sphi 0, %s30
      %s33 = sphi 0, %s32
      %s47 = sphi 0, %s33
      %s51 = sphi 0, %s51
      %s53 = sphi 0, %s51
      %s54 = sphi 0, %s53
      %s68 = sphi 0, %s54
      %s76 = sphi 0, %s78
      %s79 = sphi 0, %s76
      %s80 = sphi 0, %s79
      %s96 = sphi 0, %s80
    $region4: #{tpu_custom_call.1} parent=1 // loop_header_branch
      %13 = sbr.rel (%p11) target = $region8
    $region5: #{tpu_custom_call.1} parent=1 // loop_body
      %s15 = ssub.s32 %s10, 1
      %s16 = ssub.s32 %s10, 2
      %s23 = sadd.s32 1, %s18
      %p24 = scmp.ge.s32.totalorder %s23, 4
      %s25 = scalar_select %p24, 0, %s23
      %s26 = sadd.s32 1, %s17
      %s27 = scalar_select %p24, %s26, %s17
      %p28 = scmp.ge.s32.totalorder %s27, 2
      %s29 = scalar_select %p28, 0, %s27
      %s31 = sadd.s32 %s30, 1
      %p34 = scmp.eq.s32.totalorder %s10, 7
      %p35 = scmp.ne.s32.totalorder %s30, %s32
      %p36 = scmp.eq.s32.totalorder %s10, 0
      %p37 = por %p35, %p36
      %p38 = scmp.ne.s32.totalorder %s30, %s32
      %p39 = scmp.eq.s32.totalorder %s15, 7
      %p40 = por %p38, %p39
      %p41 = scmp.ne.s32.totalorder %s32, %s33
      %p42 = scmp.eq.s32.totalorder %s15, 0
      %p43 = por %p41, %p42
      %p44 = scmp.ne.s32.totalorder %s32, %s33
      %p45 = scmp.eq.s32.totalorder %s16, 7
      %p46 = por %p44, %p45
      %p48 = scmp.ne.s32.totalorder %s33, %s47
      %p49 = scmp.eq.s32.totalorder %s16, 0
      %p50 = por %p48, %p49
      %s52 = sadd.s32 %s51, 1
      %p55 = scmp.eq.s32.totalorder %s10, 7
      %p56 = scmp.ne.s32.totalorder %s51, %s53
      %p57 = scmp.eq.s32.totalorder %s10, 0
      %p58 = por %p56, %p57
      %p59 = scmp.ne.s32.totalorder %s51, %s53
      %p60 = scmp.eq.s32.totalorder %s15, 7
      %p61 = por %p59, %p60
      %p62 = scmp.ne.s32.totalorder %s53, %s54
      %p63 = scmp.eq.s32.totalorder %s15, 0
      %p64 = por %p62, %p63
      %p65 = scmp.ne.s32.totalorder %s53, %s54
      %p66 = scmp.eq.s32.totalorder %s16, 7
      %p67 = por %p65, %p66
      %p69 = scmp.ne.s32.totalorder %s54, %s68
      %p70 = scmp.eq.s32.totalorder %s16, 0
      %p71 = por %p69, %p70
      %s72 = ssub.s32 %s17, %s29
      %s73 = ssub.s32 %s18, %s25
      %s74 = sor.u32 %s72, %s73
      %p75 = scmp.eq.s32.totalorder %s74, 0
      %s77 = sadd.s32 %s76, 1
      %s78 = scalar_select %p75, %s76, %s77
      %p81 = pneg %p75
      %p82 = scmp.eq.s32.totalorder %s10, 7
      %p83 = por %p81, %p82
      %p84 = scmp.ne.s32.totalorder %s76, %s79
      %p85 = scmp.eq.s32.totalorder %s10, 0
      %p86 = por %p84, %p85
      %p87 = scmp.ne.s32.totalorder %s76, %s79
      %p88 = scmp.eq.s32.totalorder %s15, 7
      %p89 = por %p87, %p88
      %p90 = scmp.ne.s32.totalorder %s79, %s80
      %p91 = scmp.eq.s32.totalorder %s15, 0
      %p92 = por %p90, %p91
      %p93 = scmp.ne.s32.totalorder %s79, %s80
      %p94 = scmp.eq.s32.totalorder %s16, 7
      %p95 = por %p93, %p94
      %p97 = scmp.ne.s32.totalorder %s80, %s96
      %p98 = scmp.eq.s32.totalorder %s16, 0
      %p99 = por %p97, %p98
      %p100 = scmp.le.s32.totalorder 1, %s10
      %p101 = scmp.lt.s32.totalorder %s10, 9
      %p102 = pnand %p100, %p101
      %p103 = pneg %p102
      // Predicated region
      $region9: #{tpu_custom_call.1} parent=5 // pred_check
        _
      $region10: #{tpu_custom_call.1} parent=5 // pred_check_branch
        %105 = sbr.rel (%p102) target = $region12
      $region11: #{tpu_custom_call.1} parent=5 // pred_region
        %s106 = ssub.s32 %s10, 1
        // Predicated region
        $region13: #{tpu_custom_call.1} parent=11 // pred_check
          %p107 = pneg %p43
        $region14: #{tpu_custom_call.1} parent=11 // pred_check_branch
          %109 = sbr.rel (%p107) target = $region16
        $region15: #{tpu_custom_call.1} parent=11 // pred_region
          %s111 = ssub.s32 9216, 9216
          %112 = vsyncadd [#allocation5], %s111
          %s113 = sshll.u32 [#allocation4], 4
          %s114 = int_to_ptr.vmem [resolvable:$true] %s113
          %119 = dma.hbm_to_vmem [thread:$0]  %s1, 9216, %s114, [#allocation5], 192, 192, 12
        $region16: #{tpu_custom_call.1} parent=11 // pred_fallthru
          _
        // Predicated region
        $region17: #{tpu_custom_call.1} parent=11 // pred_check
          %p120 = pneg %p64
        $region18: #{tpu_custom_call.1} parent=11 // pred_check_branch
          %122 = sbr.rel (%p120) target = $region20
        $region19: #{tpu_custom_call.1} parent=11 // pred_region
          _
        $region20: #{tpu_custom_call.1} parent=11 // pred_fallthru
          _
      $region12: #{tpu_custom_call.1} parent=5 // pred_fallthru
        _
      %p123 = scmp.lt.s32.totalorder %s10, 8
      // Predicated region
      $region21: #{tpu_custom_call.1} parent=5 // pred_check
        %p124 = pneg %p123
      $region22: #{tpu_custom_call.1} parent=5 // pred_check_branch
        %126 = sbr.rel (%p124) target = $region24
      $region23: #{tpu_custom_call.1} parent=5 // pred_region
        _
      $region24: #{tpu_custom_call.1} parent=5 // pred_fallthru
        _
      %p127 = scmp.le.s32.totalorder 1, %s10
      %p128 = scmp.lt.s32.totalorder %s10, 9
      %p129 = pnand %p127, %p128
      %p130 = pneg %p129
      // Predicated region
      $region25: #{tpu_custom_call.1} parent=5 // pred_check
        _
      $region26: #{tpu_custom_call.1} parent=5 // pred_check_branch
        %132 = sbr.rel (%p129) target = $region28
      $region27: #{tpu_custom_call.1} parent=5 // pred_region
        %s133 = ssub.s32 %s10, 1
        // Predicated region
        $region29: #{tpu_custom_call.1} parent=27 // pred_check
          %p134 = pneg %p43
        $region30: #{tpu_custom_call.1} parent=27 // pred_check_branch
          %136 = sbr.rel (%p134) target = $region32
        $region31: #{tpu_custom_call.1} parent=27 // pred_region
          %137 = dma.done [#allocation5], 9216
        $region32: #{tpu_custom_call.1} parent=27 // pred_fallthru
          _
        %p138 = pneg %p43
        %p139 = pneg %p40
        %p140 = pneg %p64
        %p141 = pneg %p61
        %p142 = pneg %p92
        %p143 = pneg %p89
        %s144 = smul.u32 8, %s20
        %p145 = scmp.lt.s32.totalorder %s19, 1
        %s146 = scalar_select %p145, %s19, 1
        %p147 = scmp.lt.s32.totalorder %s144, 31
        %s148 = scalar_select %p147, %s144, 31
        %s149 = smul.addr %s148, 4
        %s150 = smul.addr %s146, 128
        %s151 = sadd.s32 %s149, %s150
        %s152 = smul.addr %s151, 4
        %s153 = scalar_lea.vmem %s3, %s152
        %s154 = smul.u32 8, %s20
        %p155 = scmp.lt.s32.totalorder %s19, 1
        %s156 = scalar_select %p155, %s19, 1
        %p157 = scmp.lt.s32.totalorder %s154, 31
        %s158 = scalar_select %p157, %s154, 31
        %s159 = smul.addr %s158, 4
        %s160 = smul.addr %s156, 128
        %s161 = sadd.s32 %s159, %s160
        %s162 = smul.addr %s161, 4
        %s163 = scalar_lea.vmem %s3, %s162
        %s164 = smul.u32 8, %s20
        %s166 = smul.u32 %s19, 34
        %s167 = smul.u32 %s20, 8
        %s168 = sadd.s32 %s166, %s167
        %s169 = smul.u32 %s168, 32
        %s170 = sshra.s32 %s169, 3
        %s171 = sand.u32 %s169, 7
        %s172 = smul.addr %s170, 64
        %s173 = scalar_lea.hbm %s0, %s172
        // Predicated region
        $region33: #{tpu_custom_call.1} parent=27 // pred_check
          _
        $region34: #{tpu_custom_call.1} parent=27 // pred_check_branch
          %175 = sbr.rel target = $region36
        $region35: #{tpu_custom_call.1} parent=27 // pred_region
          %176 = sst [smem:[#allocation8]] [#allocation7]
          %177 = sst [smem:[#allocation9]] [#allocation6]
        $region36: #{tpu_custom_call.1} parent=27 // pred_fallthru
          _
        %179 = shalt.err (0)
        %s181 = sshll.u32 [#allocation2], 4
        %s182 = int_to_ptr.vmem [resolvable:$true] %s181
        %184 = dma.hbm_to_vmem [thread:$0]  %s173, 2560, %s182, [#allocation3]
        %s185 = smul.u32 4, 40
        %s186 = smul.u32 %s185, 1
        %s187 = sshll.u32 %s186, 4
        %188 = dma.done [#allocation3], %s187
        %v189 = vld [vmem:[%s2] sm:$0x1]
        %v191 = vlaneseq
        %v192 = vshrl.u32 %v191, 7
        %v193 = vsub.s32 0, %v192
        %v194 = vrot.slane %v189, %v193
        %v196 = vld [vmem:[#allocation2] sm:$0xff]
        %v197 = vld [vmem:[#allocation2 + $0x8] sm:$0xff]
        %v198 = vld [vmem:[#allocation2 + $0x10] sm:$0xff]
        %v199 = vld [vmem:[#allocation2 + $0x18] sm:$0xff]
        %v200 = vld [vmem:[#allocation2 + $0x20] sm:$0xff]
        %v201 = vld [vmem:[#allocation2 + $0x28] sm:$0xff]
        %v202 = vld [vmem:[#allocation2 + $0x30] sm:$0xff]
        %v203 = vld [vmem:[#allocation2 + $0x38] sm:$0xff]
        %v204 = vld [vmem:[#allocation2 + $0x40] sm:$0xff]
        %v205 = vld [vmem:[#allocation2 + $0x48] sm:$0xff]
        %v206 = vld [vmem:[#allocation2 + $0x50] sm:$0xff]
        %v207 = vld [vmem:[#allocation2 + $0x58] sm:$0xff]
        %v208 = vld [vmem:[#allocation2 + $0x60] sm:$0xff]
        %v209 = vld [vmem:[#allocation2 + $0x68] sm:$0xff]
        %v210 = vld [vmem:[#allocation2 + $0x70] sm:$0xff]
        %v211 = vld [vmem:[#allocation2 + $0x78] sm:$0xff]
        %v212 = vld [vmem:[#allocation2 + $0x80] sm:$0xff]
        %v213 = vld [vmem:[#allocation2 + $0x88] sm:$0xff]
        %v214 = vld [vmem:[#allocation2 + $0x20] sm:$0xff]
        %v215 = vld [vmem:[#allocation2 + $0x28] sm:$0xff]
        %v216 = vld [vmem:[#allocation2 + $0x30] sm:$0xff]
        %v217 = vld [vmem:[#allocation2 + $0x38] sm:$0xff]
        %v218 = vld [vmem:[#allocation2 + $0x40] sm:$0xff]
        %v219 = vld [vmem:[#allocation2 + $0x48] sm:$0xff]
        %v220 = vld [vmem:[#allocation2 + $0x50] sm:$0xff]
        %v221 = vld [vmem:[#allocation2 + $0x58] sm:$0xff]
        %v222 = vld [vmem:[#allocation2 + $0x60] sm:$0xff]
        %v223 = vld [vmem:[#allocation2 + $0x68] sm:$0xff]
        %v224 = vld [vmem:[#allocation2 + $0x70] sm:$0xff]
        %v225 = vld [vmem:[#allocation2 + $0x78] sm:$0xff]
        %v226 = vld [vmem:[#allocation2 + $0x80] sm:$0xff]
        %v227 = vld [vmem:[#allocation2 + $0x88] sm:$0xff]
        %v228 = vld [vmem:[#allocation2 + $0x90] sm:$0xff]
        %v229 = vld [vmem:[#allocation2 + $0x98] sm:$0xff]
        %v230 = vld [vmem:[#allocation4] sm:$0xf]
        %v231 = vld [vmem:[#allocation4 + $0xc] sm:$0xf]
        %v232 = vld [vmem:[#allocation4 + $0x18] sm:$0xf]
        %v233 = vld [vmem:[#allocation4 + $0x24] sm:$0xf]
        %v234 = vld [vmem:[#allocation4 + $0x30] sm:$0xf]
        %v235 = vld [vmem:[#allocation4 + $0x3c] sm:$0xf]
        %v236 = vld [vmem:[#allocation4 + $0x48] sm:$0xf]
        %v237 = vld [vmem:[#allocation4 + $0x54] sm:$0xf]
        %v238 = vld [vmem:[#allocation4 + $0x60] sm:$0xf]
        %v239 = vld [vmem:[#allocation4 + $0x6c] sm:$0xf]
        %v240 = vld [vmem:[#allocation4 + $0x78] sm:$0xf]
        %v241 = vld [vmem:[#allocation4 + $0x84] sm:$0xf]
        %v242 = vld [vmem:[#allocation4 + $0x90] sm:$0xf]
        %v243 = vld [vmem:[#allocation4 + $0x9c] sm:$0xf]
        %v244 = vld [vmem:[#allocation4 + $0xa8] sm:$0xf]
        %v245 = vld [vmem:[#allocation4 + $0xb4] sm:$0xf]
        %v246 = vld [vmem:[#allocation4 + $0xc0] sm:$0xf]
        %v247 = vld [vmem:[#allocation4 + $0xcc] sm:$0xf]
        %v248 = vld [vmem:[#allocation4 + $0xd8] sm:$0xf]
        %v249 = vld [vmem:[#allocation4 + $0xe4] sm:$0xf]
        %v250 = vld [vmem:[#allocation4 + $0xf0] sm:$0xf]
        %v251 = vld [vmem:[#allocation4 + $0xfc] sm:$0xf]
        %v252 = vld [vmem:[#allocation4 + $0x108] sm:$0xf]
        %v253 = vld [vmem:[#allocation4 + $0x114] sm:$0xf]
        %v254 = vld [vmem:[#allocation4 + $0x120] sm:$0xf]
        %v255 = vld [vmem:[#allocation4 + $0x12c] sm:$0xf]
        %v256 = vld [vmem:[#allocation4 + $0x138] sm:$0xf]
        %v257 = vld [vmem:[#allocation4 + $0x144] sm:$0xf]
        %v258 = vld [vmem:[#allocation4 + $0x150] sm:$0xf]
        %v259 = vld [vmem:[#allocation4 + $0x15c] sm:$0xf]
        %v260 = vld [vmem:[#allocation4 + $0x168] sm:$0xf]
        %v261 = vld [vmem:[#allocation4 + $0x174] sm:$0xf]
        %v262 = vld [vmem:[#allocation4 + $0x180] sm:$0xf]
        %v263 = vld [vmem:[#allocation4 + $0x18c] sm:$0xf]
        %v264 = vld [vmem:[#allocation4 + $0x198] sm:$0xf]
        %v265 = vld [vmem:[#allocation4 + $0x1a4] sm:$0xf]
        %v266 = vld [vmem:[#allocation4 + $0x1b0] sm:$0xf]
        %v267 = vld [vmem:[#allocation4 + $0x1bc] sm:$0xf]
        %v268 = vld [vmem:[#allocation4 + $0x1c8] sm:$0xf]
        %v269 = vld [vmem:[#allocation4 + $0x1d4] sm:$0xf]
        %v270 = vld [vmem:[#allocation4 + $0x1e0] sm:$0xf]
        %v271 = vld [vmem:[#allocation4 + $0x1ec] sm:$0xf]
        %v272 = vld [vmem:[#allocation4 + $0x1f8] sm:$0xf]
        %v273 = vld [vmem:[#allocation4 + $0x204] sm:$0xf]
        %v274 = vld [vmem:[#allocation4 + $0x210] sm:$0xf]
        %v275 = vld [vmem:[#allocation4 + $0x21c] sm:$0xf]
        %v276 = vld [vmem:[#allocation4 + $0x228] sm:$0xf]
        %v277 = vld [vmem:[#allocation4 + $0x234] sm:$0xf]
        %v326 = vunpack.c.l.b16 %v230
        %v327 = vunpack.c.l.b16 %v231
        %v328 = vunpack.c.l.b16 %v232
        %v329 = vunpack.c.l.b16 %v233
        %v330 = vunpack.c.l.b16 %v234
        %v331 = vunpack.c.l.b16 %v235
        %v332 = vunpack.c.l.b16 %v236
        %v333 = vunpack.c.l.b16 %v237
        %v334 = vunpack.c.l.b16 %v238
        %v335 = vunpack.c.l.b16 %v239
        %v336 = vunpack.c.l.b16 %v240
        %v337 = vunpack.c.l.b16 %v241
        %v338 = vunpack.c.l.b16 %v242
        %v339 = vunpack.c.l.b16 %v243
        %v340 = vunpack.c.l.b16 %v244
        %v341 = vunpack.c.l.b16 %v245
        %v342 = vunpack.c.l.b16 %v246
        %v343 = vunpack.c.l.b16 %v247
        %v344 = vunpack.c.l.b16 %v248
        %v345 = vunpack.c.l.b16 %v249
        %v346 = vunpack.c.l.b16 %v250
        %v347 = vunpack.c.l.b16 %v251
        %v348 = vunpack.c.l.b16 %v252
        %v349 = vunpack.c.l.b16 %v253
        %v350 = vunpack.c.l.b16 %v254
        %v351 = vunpack.c.l.b16 %v255
        %v352 = vunpack.c.l.b16 %v256
        %v353 = vunpack.c.l.b16 %v257
        %v354 = vunpack.c.l.b16 %v258
        %v355 = vunpack.c.l.b16 %v259
        %v356 = vunpack.c.l.b16 %v260
        %v357 = vunpack.c.l.b16 %v261
        %v358 = vunpack.c.l.b16 %v262
        %v359 = vunpack.c.l.b16 %v263
        %v360 = vunpack.c.l.b16 %v264
        %v361 = vunpack.c.l.b16 %v265
        %v362 = vunpack.c.l.b16 %v266
        %v363 = vunpack.c.l.b16 %v267
        %v364 = vunpack.c.l.b16 %v268
        %v365 = vunpack.c.l.b16 %v269
        %v366 = vunpack.c.l.b16 %v270
        %v367 = vunpack.c.l.b16 %v271
        %v368 = vunpack.c.l.b16 %v272
        %v369 = vunpack.c.l.b16 %v273
        %v370 = vunpack.c.l.b16 %v274
        %v371 = vunpack.c.l.b16 %v275
        %v372 = vunpack.c.l.b16 %v276
        %v373 = vunpack.c.l.b16 %v277
        %v374 = vpack.c.b16 %v327, %v326
        %v375 = vpack.c.b16 %v329, %v328
        %v376 = vpack.c.b16 %v331, %v330
        %v377 = vpack.c.b16 %v333, %v332
        %v378 = vpack.c.b16 %v335, %v334
        %v379 = vpack.c.b16 %v337, %v336
        %v380 = vpack.c.b16 %v339, %v338
        %v381 = vpack.c.b16 %v341, %v340
        %v382 = vpack.c.b16 %v343, %v342
        %v383 = vpack.c.b16 %v345, %v344
        %v384 = vpack.c.b16 %v347, %v346
        %v385 = vpack.c.b16 %v349, %v348
        %v386 = vpack.c.b16 %v351, %v350
        %v387 = vpack.c.b16 %v353, %v352
        %v388 = vpack.c.b16 %v355, %v354
        %v389 = vpack.c.b16 %v357, %v356
        %v390 = vpack.c.b16 %v359, %v358
        %v391 = vpack.c.b16 %v361, %v360
        %v392 = vpack.c.b16 %v363, %v362
        %v393 = vpack.c.b16 %v365, %v364
        %v394 = vpack.c.b16 %v367, %v366
        %v395 = vpack.c.b16 %v369, %v368
        %v396 = vpack.c.b16 %v371, %v370
        %v397 = vpack.c.b16 %v373, %v372
        %422 = vmatprep.subr.bf16.mxu0 0
        %423 = vmatpush1.bf16.msra.mxu0 %v374
        %424 = vmatprep.subr.bf16.mxu0 0
        %425 = vmatpush1.bf16.msra.mxu0 %v375
        %426 = vmatprep.subr.bf16.mxu0 0
        %427 = vmatpush1.bf16.msra.mxu0 %v376
        %428 = vmatprep.subr.bf16.mxu0 0
        %429 = vmatpush1.bf16.msra.mxu0 %v377
        %430 = vmatprep.subr.bf16.mxu0 0
        %431 = vmatpush1.bf16.msra.mxu0 %v378
        %432 = vmatprep.subr.bf16.mxu0 0
        %433 = vmatpush1.bf16.msra.mxu0 %v379
        %434 = vmatprep.subr.bf16.mxu0 0
        %435 = vmatpush1.bf16.msra.mxu0 %v380
        %436 = vmatprep.subr.bf16.mxu0 0
        %437 = vmatpush1.bf16.msra.mxu0 %v381
        %438 = vmatprep.subr.bf16.mxu0 0
        %439 = vmatpush1.bf16.msra.mxu0 %v382
        %440 = vmatprep.subr.bf16.mxu0 0
        %441 = vmatpush1.bf16.msra.mxu0 %v383
        %442 = vmatprep.subr.bf16.mxu0 0
        %443 = vmatpush1.bf16.msra.mxu0 %v384
        %444 = vmatprep.subr.bf16.mxu0 0
        %445 = vmatpush1.bf16.msra.mxu0 %v385
        %446 = vmatprep.subr.bf16.mxu0 0
        %447 = vmatpush1.bf16.msra.mxu0 %v386
        %448 = vmatprep.subr.bf16.mxu0 0
        %449 = vmatpush1.bf16.msra.mxu0 %v387
        %450 = vmatprep.subr.bf16.mxu0 0
        %451 = vmatpush1.bf16.msra.mxu0 %v388
        %452 = vmatprep.subr.bf16.mxu0 0
        %453 = vmatpush1.bf16.msra.mxu0 %v389
        %454 = vmatprep.mubr.bf16.mxu0 %v198
        %455 = vmatmul.mubr.bf16.gmra.mrb[0].mxu0 %v196
        %v456 = vpop.f32.mrb[0].mxu0
        %v457 = vadd.f32 0.0, %v456
        %v458 = vpop.f32.mrb[0].mxu0
        %v459 = vpop.f32.mrb[0].mxu0
        %v460 = vadd.f32 0.0, %v459
        %v461 = vpop.f32.mrb[0].mxu0
        %462 = vmatprep.mubr.bf16.mxu0 %v199
        %463 = vmatmul.mubr.bf16.gmra.mrb[0].mxu0 %v197
        %v464 = vpop.f32.mrb[0].mxu0
        %v465 = vadd.f32 0.0, %v464
        %v466 = vpop.f32.mrb[0].mxu0
        %v467 = vpop.f32.mrb[0].mxu0
        %v468 = vadd.f32 0.0, %v467
        %v469 = vpop.f32.mrb[0].mxu0
        %470 = vmatprep.mubr.bf16.mxu0 %v200
        %471 = vmatmul.mubr.bf16.gmra.mrb[0].mxu0 %v198
        %v472 = vpop.f32.mrb[0].mxu0
        %v473 = vadd.f32 0.0, %v472
        %v474 = vpop.f32.mrb[0].mxu0
        %v475 = vpop.f32.mrb[0].mxu0
        %v476 = vadd.f32 0.0, %v475
        %v477 = vpop.f32.mrb[0].mxu0
        %478 = vmatprep.mubr.bf16.mxu0 %v201
        %479 = vmatmul.mubr.bf16.gmra.mrb[0].mxu0 %v199
        %v480 = vpop.f32.mrb[0].mxu0
        %v481 = vadd.f32 0.0, %v480
        %v482 = vpop.f32.mrb[0].mxu0
        %v483 = vpop.f32.mrb[0].mxu0
        %v484 = vadd.f32 0.0, %v483
        %v485 = vpop.f32.mrb[0].mxu0
        %486 = vmatprep.mubr.bf16.mxu0 %v202
        %487 = vmatmul.mubr.bf16.gmra.mrb[0].mxu0 %v200
        %v488 = vpop.f32.mrb[0].mxu0
        %v489 = vadd.f32 0.0, %v488
        %v490 = vpop.f32.mrb[0].mxu0
        %v491 = vpop.f32.mrb[0].mxu0
        %v492 = vadd.f32 0.0, %v491
        %v493 = vpop.f32.mrb[0].mxu0
        %494 = vmatprep.mubr.bf16.mxu0 %v203
        %495 = vmatmul.mubr.bf16.gmra.mrb[0].mxu0 %v201
        %v496 = vpop.f32.mrb[0].mxu0
        %v497 = vadd.f32 0.0, %v496
        %v498 = vpop.f32.mrb[0].mxu0
        %v499 = vpop.f32.mrb[0].mxu0
        %v500 = vadd.f32 0.0, %v499
        %v501 = vpop.f32.mrb[0].mxu0
        %502 = vmatprep.mubr.bf16.mxu0 %v204
        %503 = vmatmul.mubr.bf16.gmra.mrb[0].mxu0 %v202
        %v504 = vpop.f32.mrb[0].mxu0
        %v505 = vadd.f32 0.0, %v504
        %v506 = vpop.f32.mrb[0].mxu0
        %v507 = vpop.f32.mrb[0].mxu0
        %v508 = vadd.f32 0.0, %v507
        %v509 = vpop.f32.mrb[0].mxu0
        %510 = vmatprep.mubr.bf16.mxu0 %v205
        %511 = vmatmul.mubr.bf16.gmra.mrb[0].mxu0 %v203
        %v512 = vpop.f32.mrb[0].mxu0
        %v513 = vadd.f32 0.0, %v512
        %v514 = vpop.f32.mrb[0].mxu0
        %v515 = vpop.f32.mrb[0].mxu0
        %v516 = vadd.f32 0.0, %v515
        %v517 = vpop.f32.mrb[0].mxu0
        %518 = vmatprep.mubr.bf16.mxu0 %v206
        %519 = vmatmul.mubr.bf16.gmra.mrb[0].mxu0 %v204
        %v520 = vpop.f32.mrb[0].mxu0
        %v521 = vadd.f32 0.0, %v520
        %v522 = vpop.f32.mrb[0].mxu0
        %v523 = vpop.f32.mrb[0].mxu0
        %v524 = vadd.f32 0.0, %v523
        %v525 = vpop.f32.mrb[0].mxu0
        %526 = vmatprep.mubr.bf16.mxu0 %v207
        %527 = vmatmul.mubr.bf16.gmra.mrb[0].mxu0 %v205
        %v528 = vpop.f32.mrb[0].mxu0
        %v529 = vadd.f32 0.0, %v528
        %v530 = vpop.f32.mrb[0].mxu0
        %v531 = vpop.f32.mrb[0].mxu0
        %v532 = vadd.f32 0.0, %v531
        %v533 = vpop.f32.mrb[0].mxu0
        %534 = vmatprep.mubr.bf16.mxu0 %v208
        %535 = vmatmul.mubr.bf16.gmra.mrb[0].mxu0 %v206
        %v536 = vpop.f32.mrb[0].mxu0
        %v537 = vadd.f32 0.0, %v536
        %v538 = vpop.f32.mrb[0].mxu0
        %v539 = vpop.f32.mrb[0].mxu0
        %v540 = vadd.f32 0.0, %v539
        %v541 = vpop.f32.mrb[0].mxu0
        %542 = vmatprep.mubr.bf16.mxu0 %v209
        %543 = vmatmul.mubr.bf16.gmra.mrb[0].mxu0 %v207
        %v544 = vpop.f32.mrb[0].mxu0
        %v545 = vadd.f32 0.0, %v544
        %v546 = vpop.f32.mrb[0].mxu0
        %v547 = vpop.f32.mrb[0].mxu0
        %v548 = vadd.f32 0.0, %v547
        %v549 = vpop.f32.mrb[0].mxu0
        %550 = vmatprep.mubr.bf16.mxu0 %v210
        %551 = vmatmul.mubr.bf16.gmra.mrb[0].mxu0 %v208
        %v552 = vpop.f32.mrb[0].mxu0
        %v553 = vadd.f32 0.0, %v552
        %v554 = vpop.f32.mrb[0].mxu0
        %v555 = vpop.f32.mrb[0].mxu0
        %v556 = vadd.f32 0.0, %v555
        %v557 = vpop.f32.mrb[0].mxu0
        %558 = vmatprep.mubr.bf16.mxu0 %v211
        %559 = vmatmul.mubr.bf16.gmra.mrb[0].mxu0 %v209
        %v560 = vpop.f32.mrb[0].mxu0
        %v561 = vadd.f32 0.0, %v560
        %v562 = vpop.f32.mrb[0].mxu0
        %v563 = vpop.f32.mrb[0].mxu0
        %v564 = vadd.f32 0.0, %v563
        %v565 = vpop.f32.mrb[0].mxu0
        %566 = vmatprep.mubr.bf16.mxu0 %v212
        %567 = vmatmul.mubr.bf16.gmra.mrb[0].mxu0 %v210
        %v568 = vpop.f32.mrb[0].mxu0
        %v569 = vadd.f32 0.0, %v568
        %v570 = vpop.f32.mrb[0].mxu0
        %v571 = vpop.f32.mrb[0].mxu0
        %v572 = vadd.f32 0.0, %v571
        %v573 = vpop.f32.mrb[0].mxu0
        %574 = vmatprep.mubr.bf16.mxu0 %v213
        %575 = vmatmul.mubr.bf16.gmra.mrb[0].mxu0 %v211
        %v576 = vpop.f32.mrb[0].mxu0
        %v577 = vadd.f32 0.0, %v576
        %v578 = vpop.f32.mrb[0].mxu0
        %v579 = vpop.f32.mrb[0].mxu0
        %v580 = vadd.f32 0.0, %v579
        %v581 = vpop.f32.mrb[0].mxu0
        %582 = vdwg.mxu0
        %583 = vmatprep.subr.bf16.mxu0 0
        %584 = vmatpush1.bf16.msra.mxu0 %v390
        %585 = vmatprep.subr.bf16.mxu0 0
        %586 = vmatpush1.bf16.msra.mxu0 %v391
        %587 = vmatprep.subr.bf16.mxu0 0
        %588 = vmatpush1.bf16.msra.mxu0 %v392
        %589 = vmatprep.subr.bf16.mxu0 0
        %590 = vmatpush1.bf16.msra.mxu0 %v393
        %591 = vmatprep.subr.bf16.mxu0 0
        %592 = vmatpush1.bf16.msra.mxu0 %v394
        %593 = vmatprep.subr.bf16.mxu0 0
        %594 = vmatpush1.bf16.msra.mxu0 %v395
        %595 = vmatprep.subr.bf16.mxu0 0
        %596 = vmatpush1.bf16.msra.mxu0 %v396
        %597 = vmatprep.subr.bf16.mxu0 0
        %598 = vmatpush1.bf16.msra.mxu0 %v397
        %599 = vmatprep.subr.bf16.mxu0 0
        %600 = vmatpush1.bf16.msra.mxu0 0
        %601 = vmatprep.subr.bf16.mxu0 0
        %602 = vmatpush1.bf16.msra.mxu0 0
        %603 = vmatprep.subr.bf16.mxu0 0
        %604 = vmatpush1.bf16.msra.mxu0 0
        %605 = vmatprep.subr.bf16.mxu0 0
        %606 = vmatpush1.bf16.msra.mxu0 0
        %607 = vmatprep.subr.bf16.mxu0 0
        %608 = vmatpush1.bf16.msra.mxu0 0
        %609 = vmatprep.subr.bf16.mxu0 0
        %610 = vmatpush1.bf16.msra.mxu0 0
        %611 = vmatprep.subr.bf16.mxu0 0
        %612 = vmatpush1.bf16.msra.mxu0 0
        %613 = vmatprep.subr.bf16.mxu0 0
        %614 = vmatpush1.bf16.msra.mxu0 0
        %615 = vmatprep.mubr.bf16.mxu0 0
        %616 = vmatmul.mubr.bf16.gmra.mrb[0].mxu0 %v214
        %v617 = vpop.f32.mrb[0].mxu0
        %v618 = vadd.f32 %v457, %v617
        %v619 = vpop.f32.mrb[0].mxu0
        %v620 = vpop.f32.mrb[0].mxu0
        %v621 = vadd.f32 %v460, %v620
        %v622 = vpop.f32.mrb[0].mxu0
        %623 = vmatprep.mubr.bf16.mxu0 0
        %624 = vmatmul.mubr.bf16.gmra.mrb[0].mxu0 %v215
        %v625 = vpop.f32.mrb[0].mxu0
        %v626 = vadd.f32 %v465, %v625
        %v627 = vpop.f32.mrb[0].mxu0
        %v628 = vpop.f32.mrb[0].mxu0
        %v629 = vadd.f32 %v468, %v628
        %v630 = vpop.f32.mrb[0].mxu0
        %631 = vmatprep.mubr.bf16.mxu0 0
        %632 = vmatmul.mubr.bf16.gmra.mrb[0].mxu0 %v216
        %v633 = vpop.f32.mrb[0].mxu0
        %v634 = vadd.f32 %v473, %v633
        %v635 = vpop.f32.mrb[0].mxu0
        %v636 = vpop.f32.mrb[0].mxu0
        %v637 = vadd.f32 %v476, %v636
        %v638 = vpop.f32.mrb[0].mxu0
        %639 = vmatprep.mubr.bf16.mxu0 0
        %640 = vmatmul.mubr.bf16.gmra.mrb[0].mxu0 %v217
        %v641 = vpop.f32.mrb[0].mxu0
        %v642 = vadd.f32 %v481, %v641
        %v643 = vpop.f32.mrb[0].mxu0
        %v644 = vpop.f32.mrb[0].mxu0
        %v645 = vadd.f32 %v484, %v644
        %v646 = vpop.f32.mrb[0].mxu0
        %647 = vmatprep.mubr.bf16.mxu0 0
        %648 = vmatmul.mubr.bf16.gmra.mrb[0].mxu0 %v218
        %v649 = vpop.f32.mrb[0].mxu0
        %v650 = vadd.f32 %v489, %v649
        %v651 = vpop.f32.mrb[0].mxu0
        %v652 = vpop.f32.mrb[0].mxu0
        %v653 = vadd.f32 %v492, %v652
        %v654 = vpop.f32.mrb[0].mxu0
        %655 = vmatprep.mubr.bf16.mxu0 0
        %656 = vmatmul.mubr.bf16.gmra.mrb[0].mxu0 %v219
        %v657 = vpop.f32.mrb[0].mxu0
        %v658 = vadd.f32 %v497, %v657
        %v659 = vpop.f32.mrb[0].mxu0
        %v660 = vpop.f32.mrb[0].mxu0
        %v661 = vadd.f32 %v500, %v660
        %v662 = vpop.f32.mrb[0].mxu0
        %663 = vmatprep.mubr.bf16.mxu0 0
        %664 = vmatmul.mubr.bf16.gmra.mrb[0].mxu0 %v220
        %v665 = vpop.f32.mrb[0].mxu0
        %v666 = vadd.f32 %v505, %v665
        %v667 = vpop.f32.mrb[0].mxu0
        %v668 = vpop.f32.mrb[0].mxu0
        %v669 = vadd.f32 %v508, %v668
        %v670 = vpop.f32.mrb[0].mxu0
        %671 = vmatprep.mubr.bf16.mxu0 0
        %672 = vmatmul.mubr.bf16.gmra.mrb[0].mxu0 %v221
        %v673 = vpop.f32.mrb[0].mxu0
        %v674 = vadd.f32 %v513, %v673
        %v675 = vpop.f32.mrb[0].mxu0
        %v676 = vpop.f32.mrb[0].mxu0
        %v677 = vadd.f32 %v516, %v676
        %v678 = vpop.f32.mrb[0].mxu0
        %679 = vmatprep.mubr.bf16.mxu0 0
        %680 = vmatmul.mubr.bf16.gmra.mrb[0].mxu0 %v222
        %v681 = vpop.f32.mrb[0].mxu0
        %v682 = vadd.f32 %v521, %v681
        %v683 = vpop.f32.mrb[0].mxu0
        %v684 = vpop.f32.mrb[0].mxu0
        %v685 = vadd.f32 %v524, %v684
        %v686 = vpop.f32.mrb[0].mxu0
        %687 = vmatprep.mubr.bf16.mxu0 0
        %688 = vmatmul.mubr.bf16.gmra.mrb[0].mxu0 %v223
        %v689 = vpop.f32.mrb[0].mxu0
        %v690 = vadd.f32 %v529, %v689
        %v691 = vpop.f32.mrb[0].mxu0
        %v692 = vpop.f32.mrb[0].mxu0
        %v693 = vadd.f32 %v532, %v692
        %v694 = vpop.f32.mrb[0].mxu0
        %695 = vmatprep.mubr.bf16.mxu0 0
        %696 = vmatmul.mubr.bf16.gmra.mrb[0].mxu0 %v224
        %v697 = vpop.f32.mrb[0].mxu0
        %v698 = vadd.f32 %v537, %v697
        %v699 = vpop.f32.mrb[0].mxu0
        %v700 = vpop.f32.mrb[0].mxu0
        %v701 = vadd.f32 %v540, %v700
        %v702 = vpop.f32.mrb[0].mxu0
        %703 = vmatprep.mubr.bf16.mxu0 0
        %704 = vmatmul.mubr.bf16.gmra.mrb[0].mxu0 %v225
        %v705 = vpop.f32.mrb[0].mxu0
        %v706 = vadd.f32 %v545, %v705
        %v707 = vpop.f32.mrb[0].mxu0
        %v708 = vpop.f32.mrb[0].mxu0
        %v709 = vadd.f32 %v548, %v708
        %v710 = vpop.f32.mrb[0].mxu0
        %711 = vmatprep.mubr.bf16.mxu0 0
        %712 = vmatmul.mubr.bf16.gmra.mrb[0].mxu0 %v226
        %v713 = vpop.f32.mrb[0].mxu0
        %v714 = vadd.f32 %v553, %v713
        %v715 = vpop.f32.mrb[0].mxu0
        %v716 = vpop.f32.mrb[0].mxu0
        %v717 = vadd.f32 %v556, %v716
        %v718 = vpop.f32.mrb[0].mxu0
        %719 = vmatprep.mubr.bf16.mxu0 0
        %720 = vmatmul.mubr.bf16.gmra.mrb[0].mxu0 %v227
        %v721 = vpop.f32.mrb[0].mxu0
        %v722 = vadd.f32 %v561, %v721
        %v723 = vpop.f32.mrb[0].mxu0
        %v724 = vpop.f32.mrb[0].mxu0
        %v725 = vadd.f32 %v564, %v724
        %v726 = vpop.f32.mrb[0].mxu0
        %727 = vmatprep.mubr.bf16.mxu0 0
        %728 = vmatmul.mubr.bf16.gmra.mrb[0].mxu0 %v228
        %v729 = vpop.f32.mrb[0].mxu0
        %v730 = vadd.f32 %v569, %v729
        %v731 = vpop.f32.mrb[0].mxu0
        %v732 = vpop.f32.mrb[0].mxu0
        %v733 = vadd.f32 %v572, %v732
        %v734 = vpop.f32.mrb[0].mxu0
        %735 = vmatprep.mubr.bf16.mxu0 0
        %736 = vmatmul.mubr.bf16.gmra.mrb[0].mxu0 %v229
        %v737 = vpop.f32.mrb[0].mxu0
        %v738 = vadd.f32 %v577, %v737
        %v739 = vpop.f32.mrb[0].mxu0
        %v740 = vpop.f32.mrb[0].mxu0
        %v741 = vadd.f32 %v580, %v740
        %v742 = vpop.f32.mrb[0].mxu0
        %743 = vdwg.mxu0
        %v744 = vadd.f32 %v194, %v618
        %v745 = vadd.f32 %v194, %v621
        %v746 = vadd.f32 %v194, %v626
        %v747 = vadd.f32 %v194, %v629
        %v748 = vadd.f32 %v194, %v634
        %v749 = vadd.f32 %v194, %v637
        %v750 = vadd.f32 %v194, %v642
        %v751 = vadd.f32 %v194, %v645
        %v752 = vadd.f32 %v194, %v650
        %v753 = vadd.f32 %v194, %v653
        %v754 = vadd.f32 %v194, %v658
        %v755 = vadd.f32 %v194, %v661
        %v756 = vadd.f32 %v194, %v666
        %v757 = vadd.f32 %v194, %v669
        %v758 = vadd.f32 %v194, %v674
        %v759 = vadd.f32 %v194, %v677
        %v760 = vadd.f32 %v194, %v682
        %v761 = vadd.f32 %v194, %v685
        %v762 = vadd.f32 %v194, %v690
        %v763 = vadd.f32 %v194, %v693
        %v764 = vadd.f32 %v194, %v698
        %v765 = vadd.f32 %v194, %v701
        %v766 = vadd.f32 %v194, %v706
        %v767 = vadd.f32 %v194, %v709
        %v768 = vadd.f32 %v194, %v714
        %v769 = vadd.f32 %v194, %v717
        %v770 = vadd.f32 %v194, %v722
        %v771 = vadd.f32 %v194, %v725
        %v772 = vadd.f32 %v194, %v730
        %v773 = vadd.f32 %v194, %v733
        %v774 = vadd.f32 %v194, %v738
        %v775 = vadd.f32 %v194, %v741
        %v776 = vld [vmem:[#allocation4 + $0x4] sm:$0xf]
        %v777 = vld [vmem:[#allocation4 + $0x10] sm:$0xf]
        %v778 = vld [vmem:[#allocation4 + $0x1c] sm:$0xf]
        %v779 = vld [vmem:[#allocation4 + $0x28] sm:$0xf]
        %v780 = vld [vmem:[#allocation4 + $0x34] sm:$0xf]
        %v781 = vld [vmem:[#allocation4 + $0x40] sm:$0xf]
        %v782 = vld [vmem:[#allocation4 + $0x4c] sm:$0xf]
        %v783 = vld [vmem:[#allocation4 + $0x58] sm:$0xf]
        %v784 = vld [vmem:[#allocation4 + $0x64] sm:$0xf]
        %v785 = vld [vmem:[#allocation4 + $0x70] sm:$0xf]
        %v786 = vld [vmem:[#allocation4 + $0x7c] sm:$0xf]
        %v787 = vld [vmem:[#allocation4 + $0x88] sm:$0xf]
        %v788 = vld [vmem:[#allocation4 + $0x94] sm:$0xf]
        %v789 = vld [vmem:[#allocation4 + $0xa0] sm:$0xf]
        %v790 = vld [vmem:[#allocation4 + $0xac] sm:$0xf]
        %v791 = vld [vmem:[#allocation4 + $0xb8] sm:$0xf]
        %v792 = vld [vmem:[#allocation4 + $0xc4] sm:$0xf]
        %v793 = vld [vmem:[#allocation4 + $0xd0] sm:$0xf]
        %v794 = vld [vmem:[#allocation4 + $0xdc] sm:$0xf]
        %v795 = vld [vmem:[#allocation4 + $0xe8] sm:$0xf]
        %v796 = vld [vmem:[#allocation4 + $0xf4] sm:$0xf]
        %v797 = vld [vmem:[#allocation4 + $0x100] sm:$0xf]
        %v798 = vld [vmem:[#allocation4 + $0x10c] sm:$0xf]
        %v799 = vld [vmem:[#allocation4 + $0x118] sm:$0xf]
        %v800 = vld [vmem:[#allocation4 + $0x124] sm:$0xf]
        %v801 = vld [vmem:[#allocation4 + $0x130] sm:$0xf]
        %v802 = vld [vmem:[#allocation4 + $0x13c] sm:$0xf]
        %v803 = vld [vmem:[#allocation4 + $0x148] sm:$0xf]
        %v804 = vld [vmem:[#allocation4 + $0x154] sm:$0xf]
        %v805 = vld [vmem:[#allocation4 + $0x160] sm:$0xf]
        %v806 = vld [vmem:[#allocation4 + $0x16c] sm:$0xf]
        %v807 = vld [vmem:[#allocation4 + $0x178] sm:$0xf]
        %v808 = vld [vmem:[#allocation4 + $0x184] sm:$0xf]
        %v809 = vld [vmem:[#allocation4 + $0x190] sm:$0xf]
        %v810 = vld [vmem:[#allocation4 + $0x19c] sm:$0xf]
        %v811 = vld [vmem:[#allocation4 + $0x1a8] sm:$0xf]
        %v812 = vld [vmem:[#allocation4 + $0x1b4] sm:$0xf]
        %v813 = vld [vmem:[#allocation4 + $0x1c0] sm:$0xf]
        %v814 = vld [vmem:[#allocation4 + $0x1cc] sm:$0xf]
        %v815 = vld [vmem:[#allocation4 + $0x1d8] sm:$0xf]
        %v816 = vld [vmem:[#allocation4 + $0x1e4] sm:$0xf]
        %v817 = vld [vmem:[#allocation4 + $0x1f0] sm:$0xf]
        %v818 = vld [vmem:[#allocation4 + $0x1fc] sm:$0xf]
        %v819 = vld [vmem:[#allocation4 + $0x208] sm:$0xf]
        %v820 = vld [vmem:[#allocation4 + $0x214] sm:$0xf]
        %v821 = vld [vmem:[#allocation4 + $0x220] sm:$0xf]
        %v822 = vld [vmem:[#allocation4 + $0x22c] sm:$0xf]
        %v823 = vld [vmem:[#allocation4 + $0x238] sm:$0xf]
        %v872 = vunpack.c.l.b16 %v776
        %v873 = vunpack.c.l.b16 %v777
        %v874 = vunpack.c.l.b16 %v778
        %v875 = vunpack.c.l.b16 %v779
        %v876 = vunpack.c.l.b16 %v780
        %v877 = vunpack.c.l.b16 %v781
        %v878 = vunpack.c.l.b16 %v782
        %v879 = vunpack.c.l.b16 %v783
        %v880 = vunpack.c.l.b16 %v784
        %v881 = vunpack.c.l.b16 %v785
        %v882 = vunpack.c.l.b16 %v786
        %v883 = vunpack.c.l.b16 %v787
        %v884 = vunpack.c.l.b16 %v788
        %v885 = vunpack.c.l.b16 %v789
        %v886 = vunpack.c.l.b16 %v790
        %v887 = vunpack.c.l.b16 %v791
        %v888 = vunpack.c.l.b16 %v792
        %v889 = vunpack.c.l.b16 %v793
        %v890 = vunpack.c.l.b16 %v794
        %v891 = vunpack.c.l.b16 %v795
        %v892 = vunpack.c.l.b16 %v796
        %v893 = vunpack.c.l.b16 %v797
        %v894 = vunpack.c.l.b16 %v798
        %v895 = vunpack.c.l.b16 %v799
        %v896 = vunpack.c.l.b16 %v800
        %v897 = vunpack.c.l.b16 %v801
        %v898 = vunpack.c.l.b16 %v802
        %v899 = vunpack.c.l.b16 %v803
        %v900 = vunpack.c.l.b16 %v804
        %v901 = vunpack.c.l.b16 %v805
        %v902 = vunpack.c.l.b16 %v806
        %v903 = vunpack.c.l.b16 %v807
        %v904 = vunpack.c.l.b16 %v808
        %v905 = vunpack.c.l.b16 %v809
        %v906 = vunpack.c.l.b16 %v810
        %v907 = vunpack.c.l.b16 %v811
        %v908 = vunpack.c.l.b16 %v812
        %v909 = vunpack.c.l.b16 %v813
        %v910 = vunpack.c.l.b16 %v814
        %v911 = vunpack.c.l.b16 %v815
        %v912 = vunpack.c.l.b16 %v816
        %v913 = vunpack.c.l.b16 %v817
        %v914 = vunpack.c.l.b16 %v818
        %v915 = vunpack.c.l.b16 %v819
        %v916 = vunpack.c.l.b16 %v820
        %v917 = vunpack.c.l.b16 %v821
        %v918 = vunpack.c.l.b16 %v822
        %v919 = vunpack.c.l.b16 %v823
        %v920 = vpack.c.b16 %v873, %v872
        %v921 = vpack.c.b16 %v875, %v874
        %v922 = vpack.c.b16 %v877, %v876
        %v923 = vpack.c.b16 %v879, %v878
        %v924 = vpack.c.b16 %v881, %v880
        %v925 = vpack.c.b16 %v883, %v882
        %v926 = vpack.c.b16 %v885, %v884
        %v927 = vpack.c.b16 %v887, %v886
        %v928 = vpack.c.b16 %v889, %v888
        %v929 = vpack.c.b16 %v891, %v890
        %v930 = vpack.c.b16 %v893, %v892
        %v931 = vpack.c.b16 %v895, %v894
        %v932 = vpack.c.b16 %v897, %v896
        %v933 = vpack.c.b16 %v899, %v898
        %v934 = vpack.c.b16 %v901, %v900
        %v935 = vpack.c.b16 %v903, %v902
        %v936 = vpack.c.b16 %v905, %v904
        %v937 = vpack.c.b16 %v907, %v906
        %v938 = vpack.c.b16 %v909, %v908
        %v939 = vpack.c.b16 %v911, %v910
        %v940 = vpack.c.b16 %v913, %v912
        %v941 = vpack.c.b16 %v915, %v914
        %v942 = vpack.c.b16 %v917, %v916
        %v943 = vpack.c.b16 %v919, %v918
        %968 = vmatprep.subr.bf16.mxu0 0
        %969 = vmatpush1.bf16.msra.mxu0 %v920
        %970 = vmatprep.subr.bf16.mxu0 0
        %971 = vmatpush1.bf16.msra.mxu0 %v921
        %972 = vmatprep.subr.bf16.mxu0 0
        %973 = vmatpush1.bf16.msra.mxu0 %v922
        %974 = vmatprep.subr.bf16.mxu0 0
        %975 = vmatpush1.bf16.msra.mxu0 %v923
        %976 = vmatprep.subr.bf16.mxu0 0
        %977 = vmatpush1.bf16.msra.mxu0 %v924
        %978 = vmatprep.subr.bf16.mxu0 0
        %979 = vmatpush1.bf16.msra.mxu0 %v925
        %980 = vmatprep.subr.bf16.mxu0 0
        %981 = vmatpush1.bf16.msra.mxu0 %v926
        %982 = vmatprep.subr.bf16.mxu0 0
        %983 = vmatpush1.bf16.msra.mxu0 %v927
        %984 = vmatprep.subr.bf16.mxu0 0
        %985 = vmatpush1.bf16.msra.mxu0 %v928
        %986 = vmatprep.subr.bf16.mxu0 0
        %987 = vmatpush1.bf16.msra.mxu0 %v929
        %988 = vmatprep.subr.bf16.mxu0 0
        %989 = vmatpush1.bf16.msra.mxu0 %v930
        %990 = vmatprep.subr.bf16.mxu0 0
        %991 = vmatpush1.bf16.msra.mxu0 %v931
        %992 = vmatprep.subr.bf16.mxu0 0
        %993 = vmatpush1.bf16.msra.mxu0 %v932
        %994 = vmatprep.subr.bf16.mxu0 0
        %995 = vmatpush1.bf16.msra.mxu0 %v933
        %996 = vmatprep.subr.bf16.mxu0 0
        %997 = vmatpush1.bf16.msra.mxu0 %v934
        %998 = vmatprep.subr.bf16.mxu0 0
        %999 = vmatpush1.bf16.msra.mxu0 %v935
        %1000 = vmatprep.mubr.bf16.mxu0 %v198
        %1001 = vmatmul.mubr.bf16.gmra.mrb[0].mxu0 %v196
        %v1002 = vpop.f32.mrb[0].mxu0
        %v1003 = vadd.f32 0.0, %v1002
        %v1004 = vpop.f32.mrb[0].mxu0
        %v1005 = vpop.f32.mrb[0].mxu0
        %v1006 = vadd.f32 0.0, %v1005
        %v1007 = vpop.f32.mrb[0].mxu0
        %1008 = vmatprep.mubr.bf16.mxu0 %v199
        %1009 = vmatmul.mubr.bf16.gmra.mrb[0].mxu0 %v197
        %v1010 = vpop.f32.mrb[0].mxu0
        %v1011 = vadd.f32 0.0, %v1010
        %v1012 = vpop.f32.mrb[0].mxu0
        %v1013 = vpop.f32.mrb[0].mxu0
        %v1014 = vadd.f32 0.0, %v1013
        %v1015 = vpop.f32.mrb[0].mxu0
        %1016 = vmatprep.mubr.bf16.mxu0 %v200
        %1017 = vmatmul.mubr.bf16.gmra.mrb[0].mxu0 %v198
        %v1018 = vpop.f32.mrb[0].mxu0
        %v1019 = vadd.f32 0.0, %v1018
        %v1020 = vpop.f32.mrb[0].mxu0
        %v1021 = vpop.f32.mrb[0].mxu0
        %v1022 = vadd.f32 0.0, %v1021
        %v1023 = vpop.f32.mrb[0].mxu0
        %1024 = vmatprep.mubr.bf16.mxu0 %v201
        %1025 = vmatmul.mubr.bf16.gmra.mrb[0].mxu0 %v199
        %v1026 = vpop.f32.mrb[0].mxu0
        %v1027 = vadd.f32 0.0, %v1026
        %v1028 = vpop.f32.mrb[0].mxu0
        %v1029 = vpop.f32.mrb[0].mxu0
        %v1030 = vadd.f32 0.0, %v1029
        %v1031 = vpop.f32.mrb[0].mxu0
        %1032 = vmatprep.mubr.bf16.mxu0 %v202
        %1033 = vmatmul.mubr.bf16.gmra.mrb[0].mxu0 %v200
        %v1034 = vpop.f32.mrb[0].mxu0
        %v1035 = vadd.f32 0.0, %v1034
        %v1036 = vpop.f32.mrb[0].mxu0
        %v1037 = vpop.f32.mrb[0].mxu0
        %v1038 = vadd.f32 0.0, %v1037
        %v1039 = vpop.f32.mrb[0].mxu0
        %1040 = vmatprep.mubr.bf16.mxu0 %v203
        %1041 = vmatmul.mubr.bf16.gmra.mrb[0].mxu0 %v201
        %v1042 = vpop.f32.mrb[0].mxu0
        %v1043 = vadd.f32 0.0, %v1042
        %v1044 = vpop.f32.mrb[0].mxu0
        %v1045 = vpop.f32.mrb[0].mxu0
        %v1046 = vadd.f32 0.0, %v1045
        %v1047 = vpop.f32.mrb[0].mxu0
        %1048 = vmatprep.mubr.bf16.mxu0 %v204
        %1049 = vmatmul.mubr.bf16.gmra.mrb[0].mxu0 %v202
        %v1050 = vpop.f32.mrb[0].mxu0
        %v1051 = vadd.f32 0.0, %v1050
        %v1052 = vpop.f32.mrb[0].mxu0
        %v1053 = vpop.f32.mrb[0].mxu0
        %v1054 = vadd.f32 0.0, %v1053
        %v1055 = vpop.f32.mrb[0].mxu0
        %1056 = vmatprep.mubr.bf16.mxu0 %v205
        %1057 = vmatmul.mubr.bf16.gmra.mrb[0].mxu0 %v203
        %v1058 = vpop.f32.mrb[0].mxu0
        %v1059 = vadd.f32 0.0, %v1058
        %v1060 = vpop.f32.mrb[0].mxu0
        %v1061 = vpop.f32.mrb[0].mxu0
        %v1062 = vadd.f32 0.0, %v1061
        %v1063 = vpop.f32.mrb[0].mxu0
        %1064 = vmatprep.mubr.bf16.mxu0 %v206
        %1065 = vmatmul.mubr.bf16.gmra.mrb[0].mxu0 %v204
        %v1066 = vpop.f32.mrb[0].mxu0
        %v1067 = vadd.f32 0.0, %v1066
        %v1068 = vpop.f32.mrb[0].mxu0
        %v1069 = vpop.f32.mrb[0].mxu0
        %v1070 = vadd.f32 0.0, %v1069
        %v1071 = vpop.f32.mrb[0].mxu0
        %1072 = vmatprep.mubr.bf16.mxu0 %v207
        %1073 = vmatmul.mubr.bf16.gmra.mrb[0].mxu0 %v205
        %v1074 = vpop.f32.mrb[0].mxu0
        %v1075 = vadd.f32 0.0, %v1074
        %v1076 = vpop.f32.mrb[0].mxu0
        %v1077 = vpop.f32.mrb[0].mxu0
        %v1078 = vadd.f32 0.0, %v1077
        %v1079 = vpop.f32.mrb[0].mxu0
        %1080 = vmatprep.mubr.bf16.mxu0 %v208
        %1081 = vmatmul.mubr.bf16.gmra.mrb[0].mxu0 %v206
        %v1082 = vpop.f32.mrb[0].mxu0
        %v1083 = vadd.f32 0.0, %v1082
        %v1084 = vpop.f32.mrb[0].mxu0
        %v1085 = vpop.f32.mrb[0].mxu0
        %v1086 = vadd.f32 0.0, %v1085
        %v1087 = vpop.f32.mrb[0].mxu0
        %1088 = vmatprep.mubr.bf16.mxu0 %v209
        %1089 = vmatmul.mubr.bf16.gmra.mrb[0].mxu0 %v207
        %v1090 = vpop.f32.mrb[0].mxu0
        %v1091 = vadd.f32 0.0, %v1090
        %v1092 = vpop.f32.mrb[0].mxu0
        %v1093 = vpop.f32.mrb[0].mxu0
        %v1094 = vadd.f32 0.0, %v1093
        %v1095 = vpop.f32.mrb[0].mxu0
        %1096 = vmatprep.mubr.bf16.mxu0 %v210
        %1097 = vmatmul.mubr.bf16.gmra.mrb[0].mxu0 %v208
        %v1098 = vpop.f32.mrb[0].mxu0
        %v1099 = vadd.f32 0.0, %v1098
        %v1100 = vpop.f32.mrb[0].mxu0
        %v1101 = vpop.f32.mrb[0].mxu0
        %v1102 = vadd.f32 0.0, %v1101
        %v1103 = vpop.f32.mrb[0].mxu0
        %1104 = vmatprep.mubr.bf16.mxu0 %v211
        %1105 = vmatmul.mubr.bf16.gmra.mrb[0].mxu0 %v209
        %v1106 = vpop.f32.mrb[0].mxu0
        %v1107 = vadd.f32 0.0, %v1106
        %v1108 = vpop.f32.mrb[0].mxu0
        %v1109 = vpop.f32.mrb[0].mxu0
        %v1110 = vadd.f32 0.0, %v1109
        %v1111 = vpop.f32.mrb[0].mxu0
        %1112 = vmatprep.mubr.bf16.mxu0 %v212
        %1113 = vmatmul.mubr.bf16.gmra.mrb[0].mxu0 %v210
        %v1114 = vpop.f32.mrb[0].mxu0
        %v1115 = vadd.f32 0.0, %v1114
        %v1116 = vpop.f32.mrb[0].mxu0
        %v1117 = vpop.f32.mrb[0].mxu0
        %v1118 = vadd.f32 0.0, %v1117
        %v1119 = vpop.f32.mrb[0].mxu0
        %1120 = vmatprep.mubr.bf16.mxu0 %v213
        %1121 = vmatmul.mubr.bf16.gmra.mrb[0].mxu0 %v211
        %v1122 = vpop.f32.mrb[0].mxu0
        %v1123 = vadd.f32 0.0, %v1122
        %v1124 = vpop.f32.mrb[0].mxu0
        %v1125 = vpop.f32.mrb[0].mxu0
        %v1126 = vadd.f32 0.0, %v1125
        %v1127 = vpop.f32.mrb[0].mxu0
        %1128 = vdwg.mxu0
        %1129 = vmatprep.subr.bf16.mxu0 0
        %1130 = vmatpush1.bf16.msra.mxu0 %v936
        %1131 = vmatprep.subr.bf16.mxu0 0
        %1132 = vmatpush1.bf16.msra.mxu0 %v937
        %1133 = vmatprep.subr.bf16.mxu0 0
        %1134 = vmatpush1.bf16.msra.mxu0 %v938
        %1135 = vmatprep.subr.bf16.mxu0 0
        %1136 = vmatpush1.bf16.msra.mxu0 %v939
        %1137 = vmatprep.subr.bf16.mxu0 0
        %1138 = vmatpush1.bf16.msra.mxu0 %v940
        %1139 = vmatprep.subr.bf16.mxu0 0
        %1140 = vmatpush1.bf16.msra.mxu0 %v941
        %1141 = vmatprep.subr.bf16.mxu0 0
        %1142 = vmatpush1.bf16.msra.mxu0 %v942
        %1143 = vmatprep.subr.bf16.mxu0 0
        %1144 = vmatpush1.bf16.msra.mxu0 %v943
        %1145 = vmatprep.subr.bf16.mxu0 0
        %1146 = vmatpush1.bf16.msra.mxu0 0
        %1147 = vmatprep.subr.bf16.mxu0 0
        %1148 = vmatpush1.bf16.msra.mxu0 0
        %1149 = vmatprep.subr.bf16.mxu0 0
        %1150 = vmatpush1.bf16.msra.mxu0 0
        %1151 = vmatprep.subr.bf16.mxu0 0
        %1152 = vmatpush1.bf16.msra.mxu0 0
        %1153 = vmatprep.subr.bf16.mxu0 0
        %1154 = vmatpush1.bf16.msra.mxu0 0
        %1155 = vmatprep.subr.bf16.mxu0 0
        %1156 = vmatpush1.bf16.msra.mxu0 0
        %1157 = vmatprep.subr.bf16.mxu0 0
        %1158 = vmatpush1.bf16.msra.mxu0 0
        %1159 = vmatprep.subr.bf16.mxu0 0
        %1160 = vmatpush1.bf16.msra.mxu0 0
        %1161 = vmatprep.mubr.bf16.mxu0 0
        %1162 = vmatmul.mubr.bf16.gmra.mrb[0].mxu0 %v214
        %v1163 = vpop.f32.mrb[0].mxu0
        %v1164 = vadd.f32 %v1003, %v1163
        %v1165 = vpop.f32.mrb[0].mxu0
        %v1166 = vpop.f32.mrb[0].mxu0
        %v1167 = vadd.f32 %v1006, %v1166
        %v1168 = vpop.f32.mrb[0].mxu0
        %1169 = vmatprep.mubr.bf16.mxu0 0
        %1170 = vmatmul.mubr.bf16.gmra.mrb[0].mxu0 %v215
        %v1171 = vpop.f32.mrb[0].mxu0
        %v1172 = vadd.f32 %v1011, %v1171
        %v1173 = vpop.f32.mrb[0].mxu0
        %v1174 = vpop.f32.mrb[0].mxu0
        %v1175 = vadd.f32 %v1014, %v1174
        %v1176 = vpop.f32.mrb[0].mxu0
        %1177 = vmatprep.mubr.bf16.mxu0 0
        %1178 = vmatmul.mubr.bf16.gmra.mrb[0].mxu0 %v216
        %v1179 = vpop.f32.mrb[0].mxu0
        %v1180 = vadd.f32 %v1019, %v1179
        %v1181 = vpop.f32.mrb[0].mxu0
        %v1182 = vpop.f32.mrb[0].mxu0
        %v1183 = vadd.f32 %v1022, %v1182
        %v1184 = vpop.f32.mrb[0].mxu0
        %1185 = vmatprep.mubr.bf16.mxu0 0
        %1186 = vmatmul.mubr.bf16.gmra.mrb[0].mxu0 %v217
        %v1187 = vpop.f32.mrb[0].mxu0
        %v1188 = vadd.f32 %v1027, %v1187
        %v1189 = vpop.f32.mrb[0].mxu0
        %v1190 = vpop.f32.mrb[0].mxu0
        %v1191 = vadd.f32 %v1030, %v1190
        %v1192 = vpop.f32.mrb[0].mxu0
        %1193 = vmatprep.mubr.bf16.mxu0 0
        %1194 = vmatmul.mubr.bf16.gmra.mrb[0].mxu0 %v218
        %v1195 = vpop.f32.mrb[0].mxu0
        %v1196 = vadd.f32 %v1035, %v1195
        %v1197 = vpop.f32.mrb[0].mxu0
        %v1198 = vpop.f32.mrb[0].mxu0
        %v1199 = vadd.f32 %v1038, %v1198
        %v1200 = vpop.f32.mrb[0].mxu0
        %1201 = vmatprep.mubr.bf16.mxu0 0
        %1202 = vmatmul.mubr.bf16.gmra.mrb[0].mxu0 %v219
        %v1203 = vpop.f32.mrb[0].mxu0
        %v1204 = vadd.f32 %v1043, %v1203
        %v1205 = vpop.f32.mrb[0].mxu0
        %v1206 = vpop.f32.mrb[0].mxu0
        %v1207 = vadd.f32 %v1046, %v1206
        %v1208 = vpop.f32.mrb[0].mxu0
        %1209 = vmatprep.mubr.bf16.mxu0 0
        %1210 = vmatmul.mubr.bf16.gmra.mrb[0].mxu0 %v220
        %v1211 = vpop.f32.mrb[0].mxu0
        %v1212 = vadd.f32 %v1051, %v1211
        %v1213 = vpop.f32.mrb[0].mxu0
        %v1214 = vpop.f32.mrb[0].mxu0
        %v1215 = vadd.f32 %v1054, %v1214
        %v1216 = vpop.f32.mrb[0].mxu0
        %1217 = vmatprep.mubr.bf16.mxu0 0
        %1218 = vmatmul.mubr.bf16.gmra.mrb[0].mxu0 %v221
        %v1219 = vpop.f32.mrb[0].mxu0
        %v1220 = vadd.f32 %v1059, %v1219
        %v1221 = vpop.f32.mrb[0].mxu0
        %v1222 = vpop.f32.mrb[0].mxu0
        %v1223 = vadd.f32 %v1062, %v1222
        %v1224 = vpop.f32.mrb[0].mxu0
        %1225 = vmatprep.mubr.bf16.mxu0 0
        %1226 = vmatmul.mubr.bf16.gmra.mrb[0].mxu0 %v222
        %v1227 = vpop.f32.mrb[0].mxu0
        %v1228 = vadd.f32 %v1067, %v1227
        %v1229 = vpop.f32.mrb[0].mxu0
        %v1230 = vpop.f32.mrb[0].mxu0
        %v1231 = vadd.f32 %v1070, %v1230
        %v1232 = vpop.f32.mrb[0].mxu0
        %1233 = vmatprep.mubr.bf16.mxu0 0
        %1234 = vmatmul.mubr.bf16.gmra.mrb[0].mxu0 %v223
        %v1235 = vpop.f32.mrb[0].mxu0
        %v1236 = vadd.f32 %v1075, %v1235
        %v1237 = vpop.f32.mrb[0].mxu0
        %v1238 = vpop.f32.mrb[0].mxu0
        %v1239 = vadd.f32 %v1078, %v1238
        %v1240 = vpop.f32.mrb[0].mxu0
        %1241 = vmatprep.mubr.bf16.mxu0 0
        %1242 = vmatmul.mubr.bf16.gmra.mrb[0].mxu0 %v224
        %v1243 = vpop.f32.mrb[0].mxu0
        %v1244 = vadd.f32 %v1083, %v1243
        %v1245 = vpop.f32.mrb[0].mxu0
        %v1246 = vpop.f32.mrb[0].mxu0
        %v1247 = vadd.f32 %v1086, %v1246
        %v1248 = vpop.f32.mrb[0].mxu0
        %1249 = vmatprep.mubr.bf16.mxu0 0
        %1250 = vmatmul.mubr.bf16.gmra.mrb[0].mxu0 %v225
        %v1251 = vpop.f32.mrb[0].mxu0
        %v1252 = vadd.f32 %v1091, %v1251
        %v1253 = vpop.f32.mrb[0].mxu0
        %v1254 = vpop.f32.mrb[0].mxu0
        %v1255 = vadd.f32 %v1094, %v1254
        %v1256 = vpop.f32.mrb[0].mxu0
        %1257 = vmatprep.mubr.bf16.mxu0 0
        %1258 = vmatmul.mubr.bf16.gmra.mrb[0].mxu0 %v226
        %v1259 = vpop.f32.mrb[0].mxu0
        %v1260 = vadd.f32 %v1099, %v1259
        %v1261 = vpop.f32.mrb[0].mxu0
        %v1262 = vpop.f32.mrb[0].mxu0
        %v1263 = vadd.f32 %v1102, %v1262
        %v1264 = vpop.f32.mrb[0].mxu0
        %1265 = vmatprep.mubr.bf16.mxu0 0
        %1266 = vmatmul.mubr.bf16.gmra.mrb[0].mxu0 %v227
        %v1267 = vpop.f32.mrb[0].mxu0
        %v1268 = vadd.f32 %v1107, %v1267
        %v1269 = vpop.f32.mrb[0].mxu0
        %v1270 = vpop.f32.mrb[0].mxu0
        %v1271 = vadd.f32 %v1110, %v1270
        %v1272 = vpop.f32.mrb[0].mxu0
        %1273 = vmatprep.mubr.bf16.mxu0 0
        %1274 = vmatmul.mubr.bf16.gmra.mrb[0].mxu0 %v228
        %v1275 = vpop.f32.mrb[0].mxu0
        %v1276 = vadd.f32 %v1115, %v1275
        %v1277 = vpop.f32.mrb[0].mxu0
        %v1278 = vpop.f32.mrb[0].mxu0
        %v1279 = vadd.f32 %v1118, %v1278
        %v1280 = vpop.f32.mrb[0].mxu0
        %1281 = vmatprep.mubr.bf16.mxu0 0
        %1282 = vmatmul.mubr.bf16.gmra.mrb[0].mxu0 %v229
        %v1283 = vpop.f32.mrb[0].mxu0
        %v1284 = vadd.f32 %v1123, %v1283
        %v1285 = vpop.f32.mrb[0].mxu0
        %v1286 = vpop.f32.mrb[0].mxu0
        %v1287 = vadd.f32 %v1126, %v1286
        %v1288 = vpop.f32.mrb[0].mxu0
        %1289 = vdwg.mxu0
        %v1290 = vrot.slane %v1164, 1
        %v1291 = vrot.slane %v1167, 1
        %v1292 = vrot.slane %v1172, 1
        %v1293 = vrot.slane %v1175, 1
        %v1294 = vrot.slane %v1180, 1
        %v1295 = vrot.slane %v1183, 1
        %v1296 = vrot.slane %v1188, 1
        %v1297 = vrot.slane %v1191, 1
        %v1298 = vrot.slane %v1196, 1
        %v1299 = vrot.slane %v1199, 1
        %v1300 = vrot.slane %v1204, 1
        %v1301 = vrot.slane %v1207, 1
        %v1302 = vrot.slane %v1212, 1
        %v1303 = vrot.slane %v1215, 1
        %v1304 = vrot.slane %v1220, 1
        %v1305 = vrot.slane %v1223, 1
        %v1306 = vrot.slane %v1228, 1
        %v1307 = vrot.slane %v1231, 1
        %v1308 = vrot.slane %v1236, 1
        %v1309 = vrot.slane %v1239, 1
        %v1310 = vrot.slane %v1244, 1
        %v1311 = vrot.slane %v1247, 1
        %v1312 = vrot.slane %v1252, 1
        %v1313 = vrot.slane %v1255, 1
        %v1314 = vrot.slane %v1260, 1
        %v1315 = vrot.slane %v1263, 1
        %v1316 = vrot.slane %v1268, 1
        %v1317 = vrot.slane %v1271, 1
        %v1318 = vrot.slane %v1276, 1
        %v1319 = vrot.slane %v1279, 1
        %v1320 = vrot.slane %v1284, 1
        %v1321 = vrot.slane %v1287, 1
        %v1322 = vlaneseq
        %v1323 = vshrl.u32 %v1322, 7
        %vm1324 = vcmp.lt.s32.totalorder %v1323, 7
        %v1325 = vsel %vm1324, %v1320, %v1321
        %v1326 = vsel %vm1324, %v1319, %v1320
        %v1327 = vsel %vm1324, %v1318, %v1319
        %v1328 = vsel %vm1324, %v1317, %v1318
        %v1329 = vsel %vm1324, %v1316, %v1317
        %v1330 = vsel %vm1324, %v1315, %v1316
        %v1331 = vsel %vm1324, %v1314, %v1315
        %v1332 = vsel %vm1324, %v1313, %v1314
        %v1333 = vsel %vm1324, %v1312, %v1313
        %v1334 = vsel %vm1324, %v1311, %v1312
        %v1335 = vsel %vm1324, %v1310, %v1311
        %v1336 = vsel %vm1324, %v1309, %v1310
        %v1337 = vsel %vm1324, %v1308, %v1309
        %v1338 = vsel %vm1324, %v1307, %v1308
        %v1339 = vsel %vm1324, %v1306, %v1307
        %v1340 = vsel %vm1324, %v1305, %v1306
        %v1341 = vsel %vm1324, %v1304, %v1305
        %v1342 = vsel %vm1324, %v1303, %v1304
        %v1343 = vsel %vm1324, %v1302, %v1303
        %v1344 = vsel %vm1324, %v1301, %v1302
        %v1345 = vsel %vm1324, %v1300, %v1301
        %v1346 = vsel %vm1324, %v1299, %v1300
        %v1347 = vsel %vm1324, %v1298, %v1299
        %v1348 = vsel %vm1324, %v1297, %v1298
        %v1349 = vsel %vm1324, %v1296, %v1297
        %v1350 = vsel %vm1324, %v1295, %v1296
        %v1351 = vsel %vm1324, %v1294, %v1295
        %v1352 = vsel %vm1324, %v1293, %v1294
        %v1353 = vsel %vm1324, %v1292, %v1293
        %v1354 = vsel %vm1324, %v1291, %v1292
        %v1355 = vsel %vm1324, %v1290, %v1291
        %v1356 = vsel %vm1324, %v1321, %v1290
        %v1357 = vadd.f32 %v744, %v1355
        %v1358 = vadd.f32 %v745, %v1354
        %v1359 = vadd.f32 %v746, %v1353
        %v1360 = vadd.f32 %v747, %v1352
        %v1361 = vadd.f32 %v748, %v1351
        %v1362 = vadd.f32 %v749, %v1350
        %v1363 = vadd.f32 %v750, %v1349
        %v1364 = vadd.f32 %v751, %v1348
        %v1365 = vadd.f32 %v752, %v1347
        %v1366 = vadd.f32 %v753, %v1346
        %v1367 = vadd.f32 %v754, %v1345
        %v1368 = vadd.f32 %v755, %v1344
        %v1369 = vadd.f32 %v756, %v1343
        %v1370 = vadd.f32 %v757, %v1342
        %v1371 = vadd.f32 %v758, %v1341
        %v1372 = vadd.f32 %v759, %v1340
        %v1373 = vadd.f32 %v760, %v1339
        %v1374 = vadd.f32 %v761, %v1338
        %v1375 = vadd.f32 %v762, %v1337
        %v1376 = vadd.f32 %v763, %v1336
        %v1377 = vadd.f32 %v764, %v1335
        %v1378 = vadd.f32 %v765, %v1334
        %v1379 = vadd.f32 %v766, %v1333
        %v1380 = vadd.f32 %v767, %v1332
        %v1381 = vadd.f32 %v768, %v1331
        %v1382 = vadd.f32 %v769, %v1330
        %v1383 = vadd.f32 %v770, %v1329
        %v1384 = vadd.f32 %v771, %v1328
        %v1385 = vadd.f32 %v772, %v1327
        %v1386 = vadd.f32 %v773, %v1326
        %v1387 = vadd.f32 %v774, %v1325
        %v1388 = vadd.f32 %v775, %v1356
        %v1389 = vld [vmem:[#allocation4 + $0x8] sm:$0xf]
        %v1390 = vld [vmem:[#allocation4 + $0x14] sm:$0xf]
        %v1391 = vld [vmem:[#allocation4 + $0x20] sm:$0xf]
        %v1392 = vld [vmem:[#allocation4 + $0x2c] sm:$0xf]
        %v1393 = vld [vmem:[#allocation4 + $0x38] sm:$0xf]
        %v1394 = vld [vmem:[#allocation4 + $0x44] sm:$0xf]
        %v1395 = vld [vmem:[#allocation4 + $0x50] sm:$0xf]
        %v1396 = vld [vmem:[#allocation4 + $0x5c] sm:$0xf]
        %v1397 = vld [vmem:[#allocation4 + $0x68] sm:$0xf]
        %v1398 = vld [vmem:[#allocation4 + $0x74] sm:$0xf]
        %v1399 = vld [vmem:[#allocation4 + $0x80] sm:$0xf]
        %v1400 = vld [vmem:[#allocation4 + $0x8c] sm:$0xf]
        %v1401 = vld [vmem:[#allocation4 + $0x98] sm:$0xf]
        %v1402 = vld [vmem:[#allocation4 + $0xa4] sm:$0xf]
        %v1403 = vld [vmem:[#allocation4 + $0xb0] sm:$0xf]
        %v1404 = vld [vmem:[#allocation4 + $0xbc] sm:$0xf]
        %v1405 = vld [vmem:[#allocation4 + $0xc8] sm:$0xf]
        %v1406 = vld [vmem:[#allocation4 + $0xd4] sm:$0xf]
        %v1407 = vld [vmem:[#allocation4 + $0xe0] sm:$0xf]
        %v1408 = vld [vmem:[#allocation4 + $0xec] sm:$0xf]
        %v1409 = vld [vmem:[#allocation4 + $0xf8] sm:$0xf]
        %v1410 = vld [vmem:[#allocation4 + $0x104] sm:$0xf]
        %v1411 = vld [vmem:[#allocation4 + $0x110] sm:$0xf]
        %v1412 = vld [vmem:[#allocation4 + $0x11c] sm:$0xf]
        %v1413 = vld [vmem:[#allocation4 + $0x128] sm:$0xf]
        %v1414 = vld [vmem:[#allocation4 + $0x134] sm:$0xf]
        %v1415 = vld [vmem:[#allocation4 + $0x140] sm:$0xf]
        %v1416 = vld [vmem:[#allocation4 + $0x14c] sm:$0xf]
        %v1417 = vld [vmem:[#allocation4 + $0x158] sm:$0xf]
        %v1418 = vld [vmem:[#allocation4 + $0x164] sm:$0xf]
        %v1419 = vld [vmem:[#allocation4 + $0x170] sm:$0xf]
        %v1420 = vld [vmem:[#allocation4 + $0x17c] sm:$0xf]
        %v1421 = vld [vmem:[#allocation4 + $0x188] sm:$0xf]
        %v1422 = vld [vmem:[#allocation4 + $0x194] sm:$0xf]
        %v1423 = vld [vmem:[#allocation4 + $0x1a0] sm:$0xf]
        %v1424 = vld [vmem:[#allocation4 + $0x1ac] sm:$0xf]
        %v1425 = vld [vmem:[#allocation4 + $0x1b8] sm:$0xf]
        %v1426 = vld [vmem:[#allocation4 + $0x1c4] sm:$0xf]
        %v1427 = vld [vmem:[#allocation4 + $0x1d0] sm:$0xf]
        %v1428 = vld [vmem:[#allocation4 + $0x1dc] sm:$0xf]
        %v1429 = vld [vmem:[#allocation4 + $0x1e8] sm:$0xf]
        %v1430 = vld [vmem:[#allocation4 + $0x1f4] sm:$0xf]
        %v1431 = vld [vmem:[#allocation4 + $0x200] sm:$0xf]
        %v1432 = vld [vmem:[#allocation4 + $0x20c] sm:$0xf]
        %v1433 = vld [vmem:[#allocation4 + $0x218] sm:$0xf]
        %v1434 = vld [vmem:[#allocation4 + $0x224] sm:$0xf]
        %v1435 = vld [vmem:[#allocation4 + $0x230] sm:$0xf]
        %v1436 = vld [vmem:[#allocation4 + $0x23c] sm:$0xf]
        %v1485 = vunpack.c.l.b16 %v1389
        %v1486 = vunpack.c.l.b16 %v1390
        %v1487 = vunpack.c.l.b16 %v1391
        %v1488 = vunpack.c.l.b16 %v1392
        %v1489 = vunpack.c.l.b16 %v1393
        %v1490 = vunpack.c.l.b16 %v1394
        %v1491 = vunpack.c.l.b16 %v1395
        %v1492 = vunpack.c.l.b16 %v1396
        %v1493 = vunpack.c.l.b16 %v1397
        %v1494 = vunpack.c.l.b16 %v1398
        %v1495 = vunpack.c.l.b16 %v1399
        %v1496 = vunpack.c.l.b16 %v1400
        %v1497 = vunpack.c.l.b16 %v1401
        %v1498 = vunpack.c.l.b16 %v1402
        %v1499 = vunpack.c.l.b16 %v1403
        %v1500 = vunpack.c.l.b16 %v1404
        %v1501 = vunpack.c.l.b16 %v1405
        %v1502 = vunpack.c.l.b16 %v1406
        %v1503 = vunpack.c.l.b16 %v1407
        %v1504 = vunpack.c.l.b16 %v1408
        %v1505 = vunpack.c.l.b16 %v1409
        %v1506 = vunpack.c.l.b16 %v1410
        %v1507 = vunpack.c.l.b16 %v1411
        %v1508 = vunpack.c.l.b16 %v1412
        %v1509 = vunpack.c.l.b16 %v1413
        %v1510 = vunpack.c.l.b16 %v1414
        %v1511 = vunpack.c.l.b16 %v1415
        %v1512 = vunpack.c.l.b16 %v1416
        %v1513 = vunpack.c.l.b16 %v1417
        %v1514 = vunpack.c.l.b16 %v1418
        %v1515 = vunpack.c.l.b16 %v1419
        %v1516 = vunpack.c.l.b16 %v1420
        %v1517 = vunpack.c.l.b16 %v1421
        %v1518 = vunpack.c.l.b16 %v1422
        %v1519 = vunpack.c.l.b16 %v1423
        %v1520 = vunpack.c.l.b16 %v1424
        %v1521 = vunpack.c.l.b16 %v1425
        %v1522 = vunpack.c.l.b16 %v1426
        %v1523 = vunpack.c.l.b16 %v1427
        %v1524 = vunpack.c.l.b16 %v1428
        %v1525 = vunpack.c.l.b16 %v1429
        %v1526 = vunpack.c.l.b16 %v1430
        %v1527 = vunpack.c.l.b16 %v1431
        %v1528 = vunpack.c.l.b16 %v1432
        %v1529 = vunpack.c.l.b16 %v1433
        %v1530 = vunpack.c.l.b16 %v1434
        %v1531 = vunpack.c.l.b16 %v1435
        %v1532 = vunpack.c.l.b16 %v1436
        %v1533 = vpack.c.b16 %v1486, %v1485
        %v1534 = vpack.c.b16 %v1488, %v1487
        %v1535 = vpack.c.b16 %v1490, %v1489
        %v1536 = vpack.c.b16 %v1492, %v1491
        %v1537 = vpack.c.b16 %v1494, %v1493
        %v1538 = vpack.c.b16 %v1496, %v1495
        %v1539 = vpack.c.b16 %v1498, %v1497
        %v1540 = vpack.c.b16 %v1500, %v1499
        %v1541 = vpack.c.b16 %v1502, %v1501
        %v1542 = vpack.c.b16 %v1504, %v1503
        %v1543 = vpack.c.b16 %v1506, %v1505
        %v1544 = vpack.c.b16 %v1508, %v1507
        %v1545 = vpack.c.b16 %v1510, %v1509
        %v1546 = vpack.c.b16 %v1512, %v1511
        %v1547 = vpack.c.b16 %v1514, %v1513
        %v1548 = vpack.c.b16 %v1516, %v1515
        %v1549 = vpack.c.b16 %v1518, %v1517
        %v1550 = vpack.c.b16 %v1520, %v1519
        %v1551 = vpack.c.b16 %v1522, %v1521
        %v1552 = vpack.c.b16 %v1524, %v1523
        %v1553 = vpack.c.b16 %v1526, %v1525
        %v1554 = vpack.c.b16 %v1528, %v1527
        %v1555 = vpack.c.b16 %v1530, %v1529
        %v1556 = vpack.c.b16 %v1532, %v1531
        %1581 = vmatprep.subr.bf16.mxu0 0
        %1582 = vmatpush1.bf16.msra.mxu0 %v1533
        %1583 = vmatprep.subr.bf16.mxu0 0
        %1584 = vmatpush1.bf16.msra.mxu0 %v1534
        %1585 = vmatprep.subr.bf16.mxu0 0
        %1586 = vmatpush1.bf16.msra.mxu0 %v1535
        %1587 = vmatprep.subr.bf16.mxu0 0
        %1588 = vmatpush1.bf16.msra.mxu0 %v1536
        %1589 = vmatprep.subr.bf16.mxu0 0
        %1590 = vmatpush1.bf16.msra.mxu0 %v1537
        %1591 = vmatprep.subr.bf16.mxu0 0
        %1592 = vmatpush1.bf16.msra.mxu0 %v1538
        %1593 = vmatprep.subr.bf16.mxu0 0
        %1594 = vmatpush1.bf16.msra.mxu0 %v1539
        %1595 = vmatprep.subr.bf16.mxu0 0
        %1596 = vmatpush1.bf16.msra.mxu0 %v1540
        %1597 = vmatprep.subr.bf16.mxu0 0
        %1598 = vmatpush1.bf16.msra.mxu0 %v1541
        %1599 = vmatprep.subr.bf16.mxu0 0
        %1600 = vmatpush1.bf16.msra.mxu0 %v1542
        %1601 = vmatprep.subr.bf16.mxu0 0
        %1602 = vmatpush1.bf16.msra.mxu0 %v1543
        %1603 = vmatprep.subr.bf16.mxu0 0
        %1604 = vmatpush1.bf16.msra.mxu0 %v1544
        %1605 = vmatprep.subr.bf16.mxu0 0
        %1606 = vmatpush1.bf16.msra.mxu0 %v1545
        %1607 = vmatprep.subr.bf16.mxu0 0
        %1608 = vmatpush1.bf16.msra.mxu0 %v1546
        %1609 = vmatprep.subr.bf16.mxu0 0
        %1610 = vmatpush1.bf16.msra.mxu0 %v1547
        %1611 = vmatprep.subr.bf16.mxu0 0
        %1612 = vmatpush1.bf16.msra.mxu0 %v1548
        %1613 = vmatprep.mubr.bf16.mxu0 %v198
        %1614 = vmatmul.mubr.bf16.gmra.mrb[0].mxu0 %v196
        %v1615 = vpop.f32.mrb[0].mxu0
        %v1616 = vadd.f32 0.0, %v1615
        %v1617 = vpop.f32.mrb[0].mxu0
        %v1618 = vpop.f32.mrb[0].mxu0
        %v1619 = vadd.f32 0.0, %v1618
        %v1620 = vpop.f32.mrb[0].mxu0
        %1621 = vmatprep.mubr.bf16.mxu0 %v199
        %1622 = vmatmul.mubr.bf16.gmra.mrb[0].mxu0 %v197
        %v1623 = vpop.f32.mrb[0].mxu0
        %v1624 = vadd.f32 0.0, %v1623
        %v1625 = vpop.f32.mrb[0].mxu0
        %v1626 = vpop.f32.mrb[0].mxu0
        %v1627 = vadd.f32 0.0, %v1626
        %v1628 = vpop.f32.mrb[0].mxu0
        %1629 = vmatprep.mubr.bf16.mxu0 %v200
        %1630 = vmatmul.mubr.bf16.gmra.mrb[0].mxu0 %v198
        %v1631 = vpop.f32.mrb[0].mxu0
        %v1632 = vadd.f32 0.0, %v1631
        %v1633 = vpop.f32.mrb[0].mxu0
        %v1634 = vpop.f32.mrb[0].mxu0
        %v1635 = vadd.f32 0.0, %v1634
        %v1636 = vpop.f32.mrb[0].mxu0
        %1637 = vmatprep.mubr.bf16.mxu0 %v201
        %1638 = vmatmul.mubr.bf16.gmra.mrb[0].mxu0 %v199
        %v1639 = vpop.f32.mrb[0].mxu0
        %v1640 = vadd.f32 0.0, %v1639
        %v1641 = vpop.f32.mrb[0].mxu0
        %v1642 = vpop.f32.mrb[0].mxu0
        %v1643 = vadd.f32 0.0, %v1642
        %v1644 = vpop.f32.mrb[0].mxu0
        %1645 = vmatprep.mubr.bf16.mxu0 %v202
        %1646 = vmatmul.mubr.bf16.gmra.mrb[0].mxu0 %v200
        %v1647 = vpop.f32.mrb[0].mxu0
        %v1648 = vadd.f32 0.0, %v1647
        %v1649 = vpop.f32.mrb[0].mxu0
        %v1650 = vpop.f32.mrb[0].mxu0
        %v1651 = vadd.f32 0.0, %v1650
        %v1652 = vpop.f32.mrb[0].mxu0
        %1653 = vmatprep.mubr.bf16.mxu0 %v203
        %1654 = vmatmul.mubr.bf16.gmra.mrb[0].mxu0 %v201
        %v1655 = vpop.f32.mrb[0].mxu0
        %v1656 = vadd.f32 0.0, %v1655
        %v1657 = vpop.f32.mrb[0].mxu0
        %v1658 = vpop.f32.mrb[0].mxu0
        %v1659 = vadd.f32 0.0, %v1658
        %v1660 = vpop.f32.mrb[0].mxu0
        %1661 = vmatprep.mubr.bf16.mxu0 %v204
        %1662 = vmatmul.mubr.bf16.gmra.mrb[0].mxu0 %v202
        %v1663 = vpop.f32.mrb[0].mxu0
        %v1664 = vadd.f32 0.0, %v1663
        %v1665 = vpop.f32.mrb[0].mxu0
        %v1666 = vpop.f32.mrb[0].mxu0
        %v1667 = vadd.f32 0.0, %v1666
        %v1668 = vpop.f32.mrb[0].mxu0
        %1669 = vmatprep.mubr.bf16.mxu0 %v205
        %1670 = vmatmul.mubr.bf16.gmra.mrb[0].mxu0 %v203
        %v1671 = vpop.f32.mrb[0].mxu0
        %v1672 = vadd.f32 0.0, %v1671
        %v1673 = vpop.f32.mrb[0].mxu0
        %v1674 = vpop.f32.mrb[0].mxu0
        %v1675 = vadd.f32 0.0, %v1674
        %v1676 = vpop.f32.mrb[0].mxu0
        %1677 = vmatprep.mubr.bf16.mxu0 %v206
        %1678 = vmatmul.mubr.bf16.gmra.mrb[0].mxu0 %v204
        %v1679 = vpop.f32.mrb[0].mxu0
        %v1680 = vadd.f32 0.0, %v1679
        %v1681 = vpop.f32.mrb[0].mxu0
        %v1682 = vpop.f32.mrb[0].mxu0
        %v1683 = vadd.f32 0.0, %v1682
        %v1684 = vpop.f32.mrb[0].mxu0
        %1685 = vmatprep.mubr.bf16.mxu0 %v207
        %1686 = vmatmul.mubr.bf16.gmra.mrb[0].mxu0 %v205
        %v1687 = vpop.f32.mrb[0].mxu0
        %v1688 = vadd.f32 0.0, %v1687
        %v1689 = vpop.f32.mrb[0].mxu0
        %v1690 = vpop.f32.mrb[0].mxu0
        %v1691 = vadd.f32 0.0, %v1690
        %v1692 = vpop.f32.mrb[0].mxu0
        %1693 = vmatprep.mubr.bf16.mxu0 %v208
        %1694 = vmatmul.mubr.bf16.gmra.mrb[0].mxu0 %v206
        %v1695 = vpop.f32.mrb[0].mxu0
        %v1696 = vadd.f32 0.0, %v1695
        %v1697 = vpop.f32.mrb[0].mxu0
        %v1698 = vpop.f32.mrb[0].mxu0
        %v1699 = vadd.f32 0.0, %v1698
        %v1700 = vpop.f32.mrb[0].mxu0
        %1701 = vmatprep.mubr.bf16.mxu0 %v209
        %1702 = vmatmul.mubr.bf16.gmra.mrb[0].mxu0 %v207
        %v1703 = vpop.f32.mrb[0].mxu0
        %v1704 = vadd.f32 0.0, %v1703
        %v1705 = vpop.f32.mrb[0].mxu0
        %v1706 = vpop.f32.mrb[0].mxu0
        %v1707 = vadd.f32 0.0, %v1706
        %v1708 = vpop.f32.mrb[0].mxu0
        %1709 = vmatprep.mubr.bf16.mxu0 %v210
        %1710 = vmatmul.mubr.bf16.gmra.mrb[0].mxu0 %v208
        %v1711 = vpop.f32.mrb[0].mxu0
        %v1712 = vadd.f32 0.0, %v1711
        %v1713 = vpop.f32.mrb[0].mxu0
        %v1714 = vpop.f32.mrb[0].mxu0
        %v1715 = vadd.f32 0.0, %v1714
        %v1716 = vpop.f32.mrb[0].mxu0
        %1717 = vmatprep.mubr.bf16.mxu0 %v211
        %1718 = vmatmul.mubr.bf16.gmra.mrb[0].mxu0 %v209
        %v1719 = vpop.f32.mrb[0].mxu0
        %v1720 = vadd.f32 0.0, %v1719
        %v1721 = vpop.f32.mrb[0].mxu0
        %v1722 = vpop.f32.mrb[0].mxu0
        %v1723 = vadd.f32 0.0, %v1722
        %v1724 = vpop.f32.mrb[0].mxu0
        %1725 = vmatprep.mubr.bf16.mxu0 %v212
        %1726 = vmatmul.mubr.bf16.gmra.mrb[0].mxu0 %v210
        %v1727 = vpop.f32.mrb[0].mxu0
        %v1728 = vadd.f32 0.0, %v1727
        %v1729 = vpop.f32.mrb[0].mxu0
        %v1730 = vpop.f32.mrb[0].mxu0
        %v1731 = vadd.f32 0.0, %v1730
        %v1732 = vpop.f32.mrb[0].mxu0
        %1733 = vmatprep.mubr.bf16.mxu0 %v213
        %1734 = vmatmul.mubr.bf16.gmra.mrb[0].mxu0 %v211
        %v1735 = vpop.f32.mrb[0].mxu0
        %v1736 = vadd.f32 0.0, %v1735
        %v1737 = vpop.f32.mrb[0].mxu0
        %v1738 = vpop.f32.mrb[0].mxu0
        %v1739 = vadd.f32 0.0, %v1738
        %v1740 = vpop.f32.mrb[0].mxu0
        %1741 = vdwg.mxu0
        %1742 = vmatprep.subr.bf16.mxu0 0
        %1743 = vmatpush1.bf16.msra.mxu0 %v1549
        %1744 = vmatprep.subr.bf16.mxu0 0
        %1745 = vmatpush1.bf16.msra.mxu0 %v1550
        %1746 = vmatprep.subr.bf16.mxu0 0
        %1747 = vmatpush1.bf16.msra.mxu0 %v1551
        %1748 = vmatprep.subr.bf16.mxu0 0
        %1749 = vmatpush1.bf16.msra.mxu0 %v1552
        %1750 = vmatprep.subr.bf16.mxu0 0
        %1751 = vmatpush1.bf16.msra.mxu0 %v1553
        %1752 = vmatprep.subr.bf16.mxu0 0
        %1753 = vmatpush1.bf16.msra.mxu0 %v1554
        %1754 = vmatprep.subr.bf16.mxu0 0
        %1755 = vmatpush1.bf16.msra.mxu0 %v1555
        %1756 = vmatprep.subr.bf16.mxu0 0
        %1757 = vmatpush1.bf16.msra.mxu0 %v1556
        %1758 = vmatprep.subr.bf16.mxu0 0
        %1759 = vmatpush1.bf16.msra.mxu0 0
        %1760 = vmatprep.subr.bf16.mxu0 0
        %1761 = vmatpush1.bf16.msra.mxu0 0
        %1762 = vmatprep.subr.bf16.mxu0 0
        %1763 = vmatpush1.bf16.msra.mxu0 0
        %1764 = vmatprep.subr.bf16.mxu0 0
        %1765 = vmatpush1.bf16.msra.mxu0 0
        %1766 = vmatprep.subr.bf16.mxu0 0
        %1767 = vmatpush1.bf16.msra.mxu0 0
        %1768 = vmatprep.subr.bf16.mxu0 0
        %1769 = vmatpush1.bf16.msra.mxu0 0
        %1770 = vmatprep.subr.bf16.mxu0 0
        %1771 = vmatpush1.bf16.msra.mxu0 0
        %1772 = vmatprep.subr.bf16.mxu0 0
        %1773 = vmatpush1.bf16.msra.mxu0 0
        %1774 = vmatprep.mubr.bf16.mxu0 0
        %1775 = vmatmul.mubr.bf16.gmra.mrb[0].mxu0 %v214
        %v1776 = vpop.f32.mrb[0].mxu0
        %v1777 = vadd.f32 %v1616, %v1776
        %v1778 = vpop.f32.mrb[0].mxu0
        %v1779 = vpop.f32.mrb[0].mxu0
        %v1780 = vadd.f32 %v1619, %v1779
        %v1781 = vpop.f32.mrb[0].mxu0
        %1782 = vmatprep.mubr.bf16.mxu0 0
        %1783 = vmatmul.mubr.bf16.gmra.mrb[0].mxu0 %v215
        %v1784 = vpop.f32.mrb[0].mxu0
        %v1785 = vadd.f32 %v1624, %v1784
        %v1786 = vpop.f32.mrb[0].mxu0
        %v1787 = vpop.f32.mrb[0].mxu0
        %v1788 = vadd.f32 %v1627, %v1787
        %v1789 = vpop.f32.mrb[0].mxu0
        %1790 = vmatprep.mubr.bf16.mxu0 0
        %1791 = vmatmul.mubr.bf16.gmra.mrb[0].mxu0 %v216
        %v1792 = vpop.f32.mrb[0].mxu0
        %v1793 = vadd.f32 %v1632, %v1792
        %v1794 = vpop.f32.mrb[0].mxu0
        %v1795 = vpop.f32.mrb[0].mxu0
        %v1796 = vadd.f32 %v1635, %v1795
        %v1797 = vpop.f32.mrb[0].mxu0
        %1798 = vmatprep.mubr.bf16.mxu0 0
        %1799 = vmatmul.mubr.bf16.gmra.mrb[0].mxu0 %v217
        %v1800 = vpop.f32.mrb[0].mxu0
        %v1801 = vadd.f32 %v1640, %v1800
        %v1802 = vpop.f32.mrb[0].mxu0
        %v1803 = vpop.f32.mrb[0].mxu0
        %v1804 = vadd.f32 %v1643, %v1803
        %v1805 = vpop.f32.mrb[0].mxu0
        %1806 = vmatprep.mubr.bf16.mxu0 0
        %1807 = vmatmul.mubr.bf16.gmra.mrb[0].mxu0 %v218
        %v1808 = vpop.f32.mrb[0].mxu0
        %v1809 = vadd.f32 %v1648, %v1808
        %v1810 = vpop.f32.mrb[0].mxu0
        %v1811 = vpop.f32.mrb[0].mxu0
        %v1812 = vadd.f32 %v1651, %v1811
        %v1813 = vpop.f32.mrb[0].mxu0
        %1814 = vmatprep.mubr.bf16.mxu0 0
        %1815 = vmatmul.mubr.bf16.gmra.mrb[0].mxu0 %v219
        %v1816 = vpop.f32.mrb[0].mxu0
        %v1817 = vadd.f32 %v1656, %v1816
        %v1818 = vpop.f32.mrb[0].mxu0
        %v1819 = vpop.f32.mrb[0].mxu0
        %v1820 = vadd.f32 %v1659, %v1819
        %v1821 = vpop.f32.mrb[0].mxu0
        %1822 = vmatprep.mubr.bf16.mxu0 0
        %1823 = vmatmul.mubr.bf16.gmra.mrb[0].mxu0 %v220
        %v1824 = vpop.f32.mrb[0].mxu0
        %v1825 = vadd.f32 %v1664, %v1824
        %v1826 = vpop.f32.mrb[0].mxu0
        %v1827 = vpop.f32.mrb[0].mxu0
        %v1828 = vadd.f32 %v1667, %v1827
        %v1829 = vpop.f32.mrb[0].mxu0
        %1830 = vmatprep.mubr.bf16.mxu0 0
        %1831 = vmatmul.mubr.bf16.gmra.mrb[0].mxu0 %v221
        %v1832 = vpop.f32.mrb[0].mxu0
        %v1833 = vadd.f32 %v1672, %v1832
        %v1834 = vpop.f32.mrb[0].mxu0
        %v1835 = vpop.f32.mrb[0].mxu0
        %v1836 = vadd.f32 %v1675, %v1835
        %v1837 = vpop.f32.mrb[0].mxu0
        %1838 = vmatprep.mubr.bf16.mxu0 0
        %1839 = vmatmul.mubr.bf16.gmra.mrb[0].mxu0 %v222
        %v1840 = vpop.f32.mrb[0].mxu0
        %v1841 = vadd.f32 %v1680, %v1840
        %v1842 = vpop.f32.mrb[0].mxu0
        %v1843 = vpop.f32.mrb[0].mxu0
        %v1844 = vadd.f32 %v1683, %v1843
        %v1845 = vpop.f32.mrb[0].mxu0
        %1846 = vmatprep.mubr.bf16.mxu0 0
        %1847 = vmatmul.mubr.bf16.gmra.mrb[0].mxu0 %v223
        %v1848 = vpop.f32.mrb[0].mxu0
        %v1849 = vadd.f32 %v1688, %v1848
        %v1850 = vpop.f32.mrb[0].mxu0
        %v1851 = vpop.f32.mrb[0].mxu0
        %v1852 = vadd.f32 %v1691, %v1851
        %v1853 = vpop.f32.mrb[0].mxu0
        %1854 = vmatprep.mubr.bf16.mxu0 0
        %1855 = vmatmul.mubr.bf16.gmra.mrb[0].mxu0 %v224
        %v1856 = vpop.f32.mrb[0].mxu0
        %v1857 = vadd.f32 %v1696, %v1856
        %v1858 = vpop.f32.mrb[0].mxu0
        %v1859 = vpop.f32.mrb[0].mxu0
        %v1860 = vadd.f32 %v1699, %v1859
        %v1861 = vpop.f32.mrb[0].mxu0
        %1862 = vmatprep.mubr.bf16.mxu0 0
        %1863 = vmatmul.mubr.bf16.gmra.mrb[0].mxu0 %v225
        %v1864 = vpop.f32.mrb[0].mxu0
        %v1865 = vadd.f32 %v1704, %v1864
        %v1866 = vpop.f32.mrb[0].mxu0
        %v1867 = vpop.f32.mrb[0].mxu0
        %v1868 = vadd.f32 %v1707, %v1867
        %v1869 = vpop.f32.mrb[0].mxu0
        %1870 = vmatprep.mubr.bf16.mxu0 0
        %1871 = vmatmul.mubr.bf16.gmra.mrb[0].mxu0 %v226
        %v1872 = vpop.f32.mrb[0].mxu0
        %v1873 = vadd.f32 %v1712, %v1872
        %v1874 = vpop.f32.mrb[0].mxu0
        %v1875 = vpop.f32.mrb[0].mxu0
        %v1876 = vadd.f32 %v1715, %v1875
        %v1877 = vpop.f32.mrb[0].mxu0
        %1878 = vmatprep.mubr.bf16.mxu0 0
        %1879 = vmatmul.mubr.bf16.gmra.mrb[0].mxu0 %v227
        %v1880 = vpop.f32.mrb[0].mxu0
        %v1881 = vadd.f32 %v1720, %v1880
        %v1882 = vpop.f32.mrb[0].mxu0
        %v1883 = vpop.f32.mrb[0].mxu0
        %v1884 = vadd.f32 %v1723, %v1883
        %v1885 = vpop.f32.mrb[0].mxu0
        %1886 = vmatprep.mubr.bf16.mxu0 0
        %1887 = vmatmul.mubr.bf16.gmra.mrb[0].mxu0 %v228
        %v1888 = vpop.f32.mrb[0].mxu0
        %v1889 = vadd.f32 %v1728, %v1888
        %v1890 = vpop.f32.mrb[0].mxu0
        %v1891 = vpop.f32.mrb[0].mxu0
        %v1892 = vadd.f32 %v1731, %v1891
        %v1893 = vpop.f32.mrb[0].mxu0
        %1894 = vmatprep.mubr.bf16.mxu0 0
        %1895 = vmatmul.mubr.bf16.gmra.mrb[0].mxu0 %v229
        %v1896 = vpop.f32.mrb[0].mxu0
        %v1897 = vadd.f32 %v1736, %v1896
        %v1898 = vpop.f32.mrb[0].mxu0
        %v1899 = vpop.f32.mrb[0].mxu0
        %v1900 = vadd.f32 %v1739, %v1899
        %v1901 = vpop.f32.mrb[0].mxu0
        %1902 = vdwg.mxu0
        %v1903 = vrot.slane %v1777, 2
        %v1904 = vrot.slane %v1780, 2
        %v1905 = vrot.slane %v1785, 2
        %v1906 = vrot.slane %v1788, 2
        %v1907 = vrot.slane %v1793, 2
        %v1908 = vrot.slane %v1796, 2
        %v1909 = vrot.slane %v1801, 2
        %v1910 = vrot.slane %v1804, 2
        %v1911 = vrot.slane %v1809, 2
        %v1912 = vrot.slane %v1812, 2
        %v1913 = vrot.slane %v1817, 2
        %v1914 = vrot.slane %v1820, 2
        %v1915 = vrot.slane %v1825, 2
        %v1916 = vrot.slane %v1828, 2
        %v1917 = vrot.slane %v1833, 2
        %v1918 = vrot.slane %v1836, 2
        %v1919 = vrot.slane %v1841, 2
        %v1920 = vrot.slane %v1844, 2
        %v1921 = vrot.slane %v1849, 2
        %v1922 = vrot.slane %v1852, 2
        %v1923 = vrot.slane %v1857, 2
        %v1924 = vrot.slane %v1860, 2
        %v1925 = vrot.slane %v1865, 2
        %v1926 = vrot.slane %v1868, 2
        %v1927 = vrot.slane %v1873, 2
        %v1928 = vrot.slane %v1876, 2
        %v1929 = vrot.slane %v1881, 2
        %v1930 = vrot.slane %v1884, 2
        %v1931 = vrot.slane %v1889, 2
        %v1932 = vrot.slane %v1892, 2
        %v1933 = vrot.slane %v1897, 2
        %v1934 = vrot.slane %v1900, 2
        %vm1935 = vcmp.lt.s32.totalorder %v1323, 6
        %v1936 = vsel %vm1935, %v1933, %v1934
        %v1937 = vsel %vm1935, %v1932, %v1933
        %v1938 = vsel %vm1935, %v1931, %v1932
        %v1939 = vsel %vm1935, %v1930, %v1931
        %v1940 = vsel %vm1935, %v1929, %v1930
        %v1941 = vsel %vm1935, %v1928, %v1929
        %v1942 = vsel %vm1935, %v1927, %v1928
        %v1943 = vsel %vm1935, %v1926, %v1927
        %v1944 = vsel %vm1935, %v1925, %v1926
        %v1945 = vsel %vm1935, %v1924, %v1925
        %v1946 = vsel %vm1935, %v1923, %v1924
        %v1947 = vsel %vm1935, %v1922, %v1923
        %v1948 = vsel %vm1935, %v1921, %v1922
        %v1949 = vsel %vm1935, %v1920, %v1921
        %v1950 = vsel %vm1935, %v1919, %v1920
        %v1951 = vsel %vm1935, %v1918, %v1919
        %v1952 = vsel %vm1935, %v1917, %v1918
        %v1953 = vsel %vm1935, %v1916, %v1917
        %v1954 = vsel %vm1935, %v1915, %v1916
        %v1955 = vsel %vm1935, %v1914, %v1915
        %v1956 = vsel %vm1935, %v1913, %v1914
        %v1957 = vsel %vm1935, %v1912, %v1913
        %v1958 = vsel %vm1935, %v1911, %v1912
        %v1959 = vsel %vm1935, %v1910, %v1911
        %v1960 = vsel %vm1935, %v1909, %v1910
        %v1961 = vsel %vm1935, %v1908, %v1909
        %v1962 = vsel %vm1935, %v1907, %v1908
        %v1963 = vsel %vm1935, %v1906, %v1907
        %v1964 = vsel %vm1935, %v1905, %v1906
        %v1965 = vsel %vm1935, %v1904, %v1905
        %v1966 = vsel %vm1935, %v1903, %v1904
        %v1967 = vsel %vm1935, %v1934, %v1903
        %v1968 = vadd.f32 %v1357, %v1966
        %v1969 = vadd.f32 %v1358, %v1965
        %v1970 = vadd.f32 %v1359, %v1964
        %v1971 = vadd.f32 %v1360, %v1963
        %v1972 = vadd.f32 %v1361, %v1962
        %v1973 = vadd.f32 %v1362, %v1961
        %v1974 = vadd.f32 %v1363, %v1960
        %v1975 = vadd.f32 %v1364, %v1959
        %v1976 = vadd.f32 %v1365, %v1958
        %v1977 = vadd.f32 %v1366, %v1957
        %v1978 = vadd.f32 %v1367, %v1956
        %v1979 = vadd.f32 %v1368, %v1955
        %v1980 = vadd.f32 %v1369, %v1954
        %v1981 = vadd.f32 %v1370, %v1953
        %v1982 = vadd.f32 %v1371, %v1952
        %v1983 = vadd.f32 %v1372, %v1951
        %v1984 = vadd.f32 %v1373, %v1950
        %v1985 = vadd.f32 %v1374, %v1949
        %v1986 = vadd.f32 %v1375, %v1948
        %v1987 = vadd.f32 %v1376, %v1947
        %v1988 = vadd.f32 %v1377, %v1946
        %v1989 = vadd.f32 %v1378, %v1945
        %v1990 = vadd.f32 %v1379, %v1944
        %v1991 = vadd.f32 %v1380, %v1943
        %v1992 = vadd.f32 %v1381, %v1942
        %v1993 = vadd.f32 %v1382, %v1941
        %v1994 = vadd.f32 %v1383, %v1940
        %v1995 = vadd.f32 %v1384, %v1939
        %v1996 = vadd.f32 %v1385, %v1938
        %v1997 = vadd.f32 %v1386, %v1937
        %v1998 = vadd.f32 %v1387, %v1936
        %v1999 = vadd.f32 %v1388, %v1967
        %v2000 = vmax.f32 %v1968, 0.0
        %v2001 = vmax.f32 %v1969, 0.0
        %v2002 = vmax.f32 %v1970, 0.0
        %v2003 = vmax.f32 %v1971, 0.0
        %v2004 = vmax.f32 %v1972, 0.0
        %v2005 = vmax.f32 %v1973, 0.0
        %v2006 = vmax.f32 %v1974, 0.0
        %v2007 = vmax.f32 %v1975, 0.0
        %v2008 = vmax.f32 %v1976, 0.0
        %v2009 = vmax.f32 %v1977, 0.0
        %v2010 = vmax.f32 %v1978, 0.0
        %v2011 = vmax.f32 %v1979, 0.0
        %v2012 = vmax.f32 %v1980, 0.0
        %v2013 = vmax.f32 %v1981, 0.0
        %v2014 = vmax.f32 %v1982, 0.0
        %v2015 = vmax.f32 %v1983, 0.0
        %v2016 = vmax.f32 %v1984, 0.0
        %v2017 = vmax.f32 %v1985, 0.0
        %v2018 = vmax.f32 %v1986, 0.0
        %v2019 = vmax.f32 %v1987, 0.0
        %v2020 = vmax.f32 %v1988, 0.0
        %v2021 = vmax.f32 %v1989, 0.0
        %v2022 = vmax.f32 %v1990, 0.0
        %v2023 = vmax.f32 %v1991, 0.0
        %v2024 = vmax.f32 %v1992, 0.0
        %v2025 = vmax.f32 %v1993, 0.0
        %v2026 = vmax.f32 %v1994, 0.0
        %v2027 = vmax.f32 %v1995, 0.0
        %v2028 = vmax.f32 %v1996, 0.0
        %v2029 = vmax.f32 %v1997, 0.0
        %v2030 = vmax.f32 %v1998, 0.0
        %v2031 = vmax.f32 %v1999, 0.0
        %v2032 = vpack.c.bf16 %v2001, %v2000
        %v2033 = vpack.c.bf16 %v2003, %v2002
        %v2034 = vpack.c.bf16 %v2005, %v2004
        %v2035 = vpack.c.bf16 %v2007, %v2006
        %v2036 = vpack.c.bf16 %v2009, %v2008
        %v2037 = vpack.c.bf16 %v2011, %v2010
        %v2038 = vpack.c.bf16 %v2013, %v2012
        %v2039 = vpack.c.bf16 %v2015, %v2014
        %v2040 = vpack.c.bf16 %v2017, %v2016
        %v2041 = vpack.c.bf16 %v2019, %v2018
        %v2042 = vpack.c.bf16 %v2021, %v2020
        %v2043 = vpack.c.bf16 %v2023, %v2022
        %v2044 = vpack.c.bf16 %v2025, %v2024
        %v2045 = vpack.c.bf16 %v2027, %v2026
        %v2046 = vpack.c.bf16 %v2029, %v2028
        %v2047 = vpack.c.bf16 %v2031, %v2030
        %v2050 = vunpack.c.l.b16 %v2032
        %v2051 = vunpack.c.h.b16 %v2032
        %v2052 = vunpack.c.l.b16 %v2033
        %v2053 = vunpack.c.h.b16 %v2033
        %v2054 = vpack.c.b16 %v2050, %v2050
        %v2055 = vpack.c.b16 %v2051, %v2051
        %v2056 = vpack.c.b16 %v2052, %v2052
        %v2057 = vpack.c.b16 %v2053, %v2053
        %2062 = vst [vmem:[%s163] sm:$0xf] %v2054
        %2063 = vst [vmem:[%s163 + $0x4] sm:$0xf] %v2055
        %2064 = vst [vmem:[%s163 + $0x8] sm:$0xf] %v2056
        %2065 = vst [vmem:[%s163 + $0xc] sm:$0x3] %v2057
        %v2068 = vunpack.c.l.b16 %v2034
        %v2069 = vunpack.c.h.b16 %v2034
        %v2070 = vunpack.c.l.b16 %v2035
        %v2071 = vunpack.c.h.b16 %v2035
        %v2072 = vpack.c.b16 %v2068, %v2068
        %v2073 = vpack.c.b16 %v2069, %v2069
        %v2074 = vpack.c.b16 %v2070, %v2070
        %v2075 = vpack.c.b16 %v2071, %v2071
        %s2080 = scalar_lea.vmem %s163, 16
        %2081 = vst [vmem:[%s2080] sm:$0xf] %v2072
        %2082 = vst [vmem:[%s2080 + $0x4] sm:$0xf] %v2073
        %2083 = vst [vmem:[%s2080 + $0x8] sm:$0xf] %v2074
        %2084 = vst [vmem:[%s2080 + $0xc] sm:$0x3] %v2075
        %v2087 = vunpack.c.l.b16 %v2036
        %v2088 = vunpack.c.h.b16 %v2036
        %v2089 = vunpack.c.l.b16 %v2037
        %v2090 = vunpack.c.h.b16 %v2037
        %v2091 = vpack.c.b16 %v2087, %v2087
        %v2092 = vpack.c.b16 %v2088, %v2088
        %v2093 = vpack.c.b16 %v2089, %v2089
        %v2094 = vpack.c.b16 %v2090, %v2090
        %s2099 = scalar_lea.vmem %s163, 32
        %2100 = vst [vmem:[%s2099] sm:$0xf] %v2091
        %2101 = vst [vmem:[%s2099 + $0x4] sm:$0xf] %v2092
        %2102 = vst [vmem:[%s2099 + $0x8] sm:$0xf] %v2093
        %2103 = vst [vmem:[%s2099 + $0xc] sm:$0x3] %v2094
        %v2106 = vunpack.c.l.b16 %v2038
        %v2107 = vunpack.c.h.b16 %v2038
        %v2108 = vunpack.c.l.b16 %v2039
        %v2109 = vunpack.c.h.b16 %v2039
        %v2110 = vpack.c.b16 %v2106, %v2106
        %v2111 = vpack.c.b16 %v2107, %v2107
        %v2112 = vpack.c.b16 %v2108, %v2108
        %v2113 = vpack.c.b16 %v2109, %v2109
        %s2118 = scalar_lea.vmem %s163, 48
        %2119 = vst [vmem:[%s2118] sm:$0xf] %v2110
        %2120 = vst [vmem:[%s2118 + $0x4] sm:$0xf] %v2111
        %2121 = vst [vmem:[%s2118 + $0x8] sm:$0xf] %v2112
        %2122 = vst [vmem:[%s2118 + $0xc] sm:$0x3] %v2113
        %v2125 = vunpack.c.l.b16 %v2040
        %v2126 = vunpack.c.h.b16 %v2040
        %v2127 = vunpack.c.l.b16 %v2041
        %v2128 = vunpack.c.h.b16 %v2041
        %v2129 = vpack.c.b16 %v2125, %v2125
        %v2130 = vpack.c.b16 %v2126, %v2126
        %v2131 = vpack.c.b16 %v2127, %v2127
        %v2132 = vpack.c.b16 %v2128, %v2128
        %s2137 = scalar_lea.vmem %s163, 64
        %2138 = vst [vmem:[%s2137] sm:$0xf] %v2129
        %2139 = vst [vmem:[%s2137 + $0x4] sm:$0xf] %v2130
        %2140 = vst [vmem:[%s2137 + $0x8] sm:$0xf] %v2131
        %2141 = vst [vmem:[%s2137 + $0xc] sm:$0x3] %v2132
        %v2144 = vunpack.c.l.b16 %v2042
        %v2145 = vunpack.c.h.b16 %v2042
        %v2146 = vunpack.c.l.b16 %v2043
        %v2147 = vunpack.c.h.b16 %v2043
        %v2148 = vpack.c.b16 %v2144, %v2144
        %v2149 = vpack.c.b16 %v2145, %v2145
        %v2150 = vpack.c.b16 %v2146, %v2146
        %v2151 = vpack.c.b16 %v2147, %v2147
        %s2156 = scalar_lea.vmem %s163, 80
        %2157 = vst [vmem:[%s2156] sm:$0xf] %v2148
        %2158 = vst [vmem:[%s2156 + $0x4] sm:$0xf] %v2149
        %2159 = vst [vmem:[%s2156 + $0x8] sm:$0xf] %v2150
        %2160 = vst [vmem:[%s2156 + $0xc] sm:$0x3] %v2151
        %v2163 = vunpack.c.l.b16 %v2044
        %v2164 = vunpack.c.h.b16 %v2044
        %v2165 = vunpack.c.l.b16 %v2045
        %v2166 = vunpack.c.h.b16 %v2045
        %v2167 = vpack.c.b16 %v2163, %v2163
        %v2168 = vpack.c.b16 %v2164, %v2164
        %v2169 = vpack.c.b16 %v2165, %v2165
        %v2170 = vpack.c.b16 %v2166, %v2166
        %s2175 = scalar_lea.vmem %s163, 96
        %2176 = vst [vmem:[%s2175] sm:$0xf] %v2167
        %2177 = vst [vmem:[%s2175 + $0x4] sm:$0xf] %v2168
        %2178 = vst [vmem:[%s2175 + $0x8] sm:$0xf] %v2169
        %2179 = vst [vmem:[%s2175 + $0xc] sm:$0x3] %v2170
        %v2182 = vunpack.c.l.b16 %v2046
        %v2183 = vunpack.c.h.b16 %v2046
        %v2184 = vunpack.c.l.b16 %v2047
        %v2185 = vunpack.c.h.b16 %v2047
        %v2186 = vpack.c.b16 %v2182, %v2182
        %v2187 = vpack.c.b16 %v2183, %v2183
        %v2188 = vpack.c.b16 %v2184, %v2184
        %v2189 = vpack.c.b16 %v2185, %v2185
        %s2194 = scalar_lea.vmem %s163, 112
        %2195 = vst [vmem:[%s2194] sm:$0xf] %v2186
        %2196 = vst [vmem:[%s2194 + $0x4] sm:$0xf] %v2187
        %2197 = vst [vmem:[%s2194 + $0x8] sm:$0xf] %v2188
        %2198 = vst [vmem:[%s2194 + $0xc] sm:$0x3] %v2189
        %s2199 = smul.u32 8, %s20
        %p2200 = scmp.lt.s32.totalorder %s19, 1
        %s2201 = scalar_select %p2200, %s19, 1
        %p2202 = scmp.lt.s32.totalorder %s2199, 31
        %s2203 = scalar_select %p2202, %s2199, 31
        %s2204 = smul.addr %s2203, 4
        %s2205 = smul.addr %s2201, 128
        %s2206 = sadd.s32 %s2204, %s2205
        %s2207 = smul.addr %s2206, 4
        %s2208 = scalar_lea.vmem %s3, %s2207
        // Predicated region
        $region37: #{tpu_custom_call.1} parent=27 // pred_check
          %p2209 = pneg %p89
        $region38: #{tpu_custom_call.1} parent=27 // pred_check_branch
          %2211 = sbr.rel (%p2209) target = $region40
        $region39: #{tpu_custom_call.1} parent=27 // pred_region
          %s2212 = smul.u32 8, %s20
        $region40: #{tpu_custom_call.1} parent=27 // pred_fallthru
          _
      $region28: #{tpu_custom_call.1} parent=5 // pred_fallthru
        _
      %p2213 = scmp.le.s32.totalorder 2, %s10
      // Predicated region
      $region41: #{tpu_custom_call.1} parent=5 // pred_check
        %p2214 = pneg %p2213
      $region42: #{tpu_custom_call.1} parent=5 // pred_check_branch
        %2216 = sbr.rel (%p2214) target = $region44
      $region43: #{tpu_custom_call.1} parent=5 // pred_region
        %s2217 = ssub.s32 %s10, 2
        // Predicated region
        $region45: #{tpu_custom_call.1} parent=43 // pred_check
          %p2218 = pneg %p95
        $region46: #{tpu_custom_call.1} parent=43 // pred_check_branch
          %2220 = sbr.rel (%p2218) target = $region48
        $region47: #{tpu_custom_call.1} parent=43 // pred_region
          %s2221 = smul.u32 8, %s22
          %p2222 = scmp.lt.s32.totalorder %s21, 1
          %s2223 = scalar_select %p2222, %s21, 1
          %p2224 = scmp.lt.s32.totalorder %s2221, 31
          %s2225 = scalar_select %p2224, %s2221, 31
          %s2226 = smul.addr %s2225, 4
          %s2227 = smul.addr %s2223, 128
          %s2228 = sadd.s32 %s2226, %s2227
          %s2229 = smul.addr %s2228, 4
          %s2230 = scalar_lea.vmem %s3, %s2229
        $region48: #{tpu_custom_call.1} parent=43 // pred_fallthru
          _
      $region44: #{tpu_custom_call.1} parent=5 // pred_fallthru
        _
    $region6: #{tpu_custom_call.1} parent=1 // loop_footer
      %s14 = sadd.s32 1, %s10
    $region7: #{tpu_custom_call.1} parent=1 // loop_footer_branch
      %9 = sbr.rel target = $region3
    $region8: #{tpu_custom_call.1} parent=1 // loop_exit
      _
    %2231 = vsyncpa [#allocation5], 1
    %s2232 = scalar_lea.sflag [#allocation5], 1
    %2233 = vsyncpa %s2232, 1
  %2234 = vsyncmov [#allocation3]
  %s2235 = vpop.sfrf %2234
  %p2236 = scmp.eq.s32.totalorder %s2235, 0
  %p2237 = pneg %p2236
  %2239 = shalt.err (%p2237)

</llo_original>
